<compile_context>
chip_gen: v7x
topology: tpu7x:2x2x1
jax: 0.10.0
libtpu: 0.0.40
codegen_flags: <defaults>
</compile_context>

<pallas_src>
import jax
import jax.numpy as jnp
from jax.experimental import pallas as pl
from jax.experimental.pallas import tpu as pltpu

EPS = 1e-5
NUM_GROUPS = 4   # hardcoded in the PyTorch module: nn.GroupNorm(4, out_dim)


def residual_block_kernel(x_ref, inj_ref, w1_ref, w2_ref, vec_ref,
                          mask_ref, maskt_ref, mtg_ref, out_ref):
    x = x_ref[...]                               # (TB, D) f32
    vec = vec_ref[...]                           # (5, D) packed per-channel params
    b1, b2 = vec[0:1], vec[1:2]
    beta1, beta2, beta3 = vec[2:3], vec[3:4], vec[4:5]
    mask_s = mask_ref[...]                       # (D, G), pre-scaled by 1/group_size
    mask_t = maskt_ref[...]                      # (G, D), plain one-hot
    mtg1 = mtg_ref[0]                            # (G, D), one-hot * gamma_1
    mtg2 = mtg_ref[1]
    mtg3 = mtg_ref[2]

    def group_norm(h, mtg, beta):
        # Per-group stats on (TB, G): two separate f32 reduction dots (no concat).
        mean_g = jnp.dot(h, mask_s, preferred_element_type=jnp.float32)      # E[x]
        ex2_g = jnp.dot(h * h, mask_s, preferred_element_type=jnp.float32)   # E[x^2]
        var_g = jnp.maximum(ex2_g - mean_g * mean_g, 0.0)
        # rsqrt at GROUP granularity (TB*G EUP ops instead of TB*D).
        inv_std_g = jax.lax.rsqrt(var_g + EPS)
        # Broadcast mean and (inv_std * gamma) back to (TB, D).
        mean = jnp.dot(mean_g, mask_t, preferred_element_type=jnp.float32)
        scale = jnp.dot(inv_std_g, mtg, preferred_element_type=jnp.float32)
        return (h - mean) * scale + beta

    # out = relu(gn1(conv1(x)))   -- conv matmuls in bf16, f32 accumulate
    h = jnp.dot(x.astype(jnp.bfloat16), w1_ref[...],
                preferred_element_type=jnp.float32) + b1
    h = jnp.maximum(group_norm(h, mtg1, beta1), 0.0)

    # out = gn2(conv2(out) + injection_feature)
    h = (jnp.dot(h.astype(jnp.bfloat16), w2_ref[...],
                 preferred_element_type=jnp.float32) + b2 + inj_ref[...])
    h = group_norm(h, mtg2, beta2)

    # out = gn3(relu(out + residual))
    h = jnp.maximum(h + x, 0.0)
    out_ref[...] = group_norm(h, mtg3, beta3)


def _auto_tile(B):
    """Prefer >=2 sublane-aligned grid steps (v7x TC split + DMA/compute
    overlap), capped at 512 rows (~85% HBM roofline in the tiling sweep)."""
    for cand in (512, 256, 128, 64, 32, 16, 8):
        if B % cand == 0 and B // cand >= 2:
            return cand
    return B


def simple_residual_block(x, injection, params, *, tb=None):
    """x:(B,D), injection:(B,D) -> (B,D).  tb: batch tile (None = auto)."""
    B, D = x.shape
    G = NUM_GROUPS
    assert D % G == 0
    if tb is None:
        tb = _auto_tile(B)
    assert B % tb == 0 and (tb == B or tb % 8 == 0)
    group_size = D // G

    # --- host-side constants (built once, outside the kernel) ---------------
    onehot = (jnp.arange(D)[:, None] // group_size
              == jnp.arange(G)[None, :]).astype(jnp.float32)          # (D, G)
    mask_s = onehot / float(group_size)       # reduction mask, 1/gs folded in
    mask_t = onehot.T                         # (G, D) plain broadcast mask
    # gamma-scaled broadcast masks, one per GroupNorm -> (3, G, D)
    mtg = jnp.stack([mask_t * params["gn1_w"][None, :],
                     mask_t * params["gn2_w"][None, :],
                     mask_t * params["gn3_w"][None, :]], axis=0)

    w1_t = params["w1"].T.astype(jnp.bfloat16)                        # (D, D)
    w2_t = params["w2"].T.astype(jnp.bfloat16)                        # (D, D)
    vec = jnp.stack([params["b1"], params["b2"],
                     params["gn1_b"], params["gn2_b"],
                     params["gn3_b"]], axis=0).astype(jnp.float32)    # (5, D)

    # --- VMEM planning (v7x has 64 MiB physical; v5e/v6e have 128 MiB) ------
    w_bytes = 2 * D * D * 2                               # both bf16 weights
    # single-buffer grid-invariant weights once double-buffering them gets big
    single_buffer_w = (2 * w_bytes) > (8 << 20)
    act_bytes = tb * D * 4
    const_bytes = (5 * D + D * 128 + 8 * D + 3 * 8 * D) * 4   # vec/mask/mask_t/mtg padded
    est = ((1 if single_buffer_w else 2) * w_bytes
           + 2 * 3 * act_bytes                   # x, injection, out (double-buffered)
           + 2 * const_bytes
           + 12 * act_bytes)                     # in-kernel f32 temporaries headroom
    vmem_limit = int(min(max(2 * est, 32 << 20), 64 << 20))

    bspec_bd = pl.BlockSpec((tb, D), lambda i: (i, 0))

    def const_spec(shape, single_buffer=False):
        index_map = lambda i, _n=len(shape): (0,) * _n
        if single_buffer:
            # grid-invariant block: double-buffering it only wastes VMEM
            return pl.BlockSpec(shape, index_map, pipeline_mode=pl.Buffered(1))
        return pl.BlockSpec(shape, index_map)

    return pl.pallas_call(
        residual_block_kernel,
        out_shape=jax.ShapeDtypeStruct((B, D), jnp.float32),
        grid=(B // tb,),
        in_specs=[
            bspec_bd, bspec_bd,                                   # x, injection
            const_spec((D, D), single_buffer_w),                  # W1^T (bf16)
            const_spec((D, D), single_buffer_w),                  # W2^T (bf16)
            const_spec((5, D)),                                   # biases + GN betas
            const_spec((D, G)),                                   # reduction mask (1/gs folded)
            const_spec((G, D)),                                   # broadcast mask
            const_spec((3, G, D)),                                # gamma-scaled broadcast masks
        ],
        out_specs=bspec_bd,
        compiler_params=pltpu.CompilerParams(
            dimension_semantics=("parallel",),
            vmem_limit_bytes=vmem_limit),
    )(x, injection, w1_t, w2_t, vec, mask_s, mask_t, mtg)


def reference(x, injection, params):
    """Pure-JAX (f32) reproduction of the PyTorch forward for validation."""
    def linear(v, w, b):
        return v @ w.T + b

    def gn(v, gamma, beta):
        b, d = v.shape
        g = v.reshape(b, NUM_GROUPS, d // NUM_GROUPS)
        mean = g.mean(axis=-1, keepdims=True)
        var = g.var(axis=-1, keepdims=True)       # biased, like torch GroupNorm
        return ((g - mean) / jnp.sqrt(var + EPS)).reshape(b, d) * gamma + beta

    out = jnp.maximum(gn(linear(x, params["w1"], params["b1"]),
                         params["gn1_w"], params["gn1_b"]), 0.0)
    out = linear(out, params["w2"], params["b2"]) + injection
    out = gn(out, params["gn2_w"], params["gn2_b"])
    out = out + x
    out = gn(jnp.maximum(out, 0.0), params["gn3_w"], params["gn3_b"])
    return out


if __name__ == "__main__":
    B, D = 16, 128        # batch, out_dim (multiple of 128 -> lane-dense)
    key = jax.random.PRNGKey(0)
    ks = jax.random.split(key, 12)

    x = jax.random.normal(ks[0], (B, D), jnp.float32)
    injection = jax.random.normal(ks[1], (B, D), jnp.float32)

    bound = 1.0 / jnp.sqrt(D)
    params = {
        "w1": jax.random.uniform(ks[2], (D, D), jnp.float32, -bound, bound),
        "b1": jax.random.uniform(ks[3], (D,), jnp.float32, -bound, bound),
        "w2": jax.random.uniform(ks[4], (D, D), jnp.float32, -bound, bound),
        "b2": jax.random.uniform(ks[5], (D,), jnp.float32, -bound, bound),
        # non-trivial GN affine params to exercise the gamma/beta path
        "gn1_w": jax.random.uniform(ks[6], (D,), jnp.float32, 0.5, 1.5),
        "gn1_b": 0.1 * jax.random.normal(ks[7], (D,), jnp.float32),
        "gn2_w": jax.random.uniform(ks[8], (D,), jnp.float32, 0.5, 1.5),
        "gn2_b": 0.1 * jax.random.normal(ks[9], (D,), jnp.float32),
        "gn3_w": jax.random.uniform(ks[10], (D,), jnp.float32, 0.5, 1.5),
        "gn3_b": 0.1 * jax.random.normal(ks[11], (D,), jnp.float32),
    }

    out = simple_residual_block(x, injection, params)
    out = jax.block_until_ready(out)

    ref = reference(x, injection, params)
    assert out.shape == (B, D)
    # tolerance covers the bf16-operand conv matmuls vs. the f32 reference
    # (GN statistics and all elementwise math remain f32 in the kernel)
    assert jnp.allclose(out, ref, atol=5e-2, rtol=5e-2)
    print("KERNEL_OK")
</pallas_src>

<mosaic_0001>
module attributes {stable_mosaic.version = 11 : i64} {
  func.func @residual_block_kernel(%arg0: i32, %arg1: memref<8x128xf32, #tpu.memory_space<vmem>>, %arg2: memref<8x128xf32, #tpu.memory_space<vmem>>, %arg3: memref<128x128xbf16, #tpu.memory_space<vmem>>, %arg4: memref<128x128xbf16, #tpu.memory_space<vmem>>, %arg5: memref<5x128xf32, #tpu.memory_space<vmem>>, %arg6: memref<128x4xf32, #tpu.memory_space<vmem>>, %arg7: memref<4x128xf32, #tpu.memory_space<vmem>>, %arg8: memref<3x4x128xf32, #tpu.memory_space<vmem>>, %arg9: memref<8x128xf32, #tpu.memory_space<vmem>>) attributes {dimension_semantics = [#tpu.dimension_semantics<parallel>], iteration_bounds = array<i64: 2>, scalar_prefetch = 0 : i64, scratch_operands = 0 : i64, tpu.core_type = #tpu.core_type<tc>, window_params = [{transform_indices = @transform_0, window_bounds = array<i64: 8, 128>}, {transform_indices = @transform_1, window_bounds = array<i64: 8, 128>}, {pipeline_mode = #tpu.pipeline_mode<synchronous>, transform_indices = @transform_2, window_bounds = array<i64: 128, 128>}, {pipeline_mode = #tpu.pipeline_mode<synchronous>, transform_indices = @transform_3, window_bounds = array<i64: 128, 128>}, {pipeline_mode = #tpu.pipeline_mode<synchronous>, transform_indices = @transform_4, window_bounds = array<i64: 5, 128>}, {pipeline_mode = #tpu.pipeline_mode<synchronous>, transform_indices = @transform_5, window_bounds = array<i64: 128, 4>}, {pipeline_mode = #tpu.pipeline_mode<synchronous>, transform_indices = @transform_6, window_bounds = array<i64: 4, 128>}, {pipeline_mode = #tpu.pipeline_mode<synchronous>, transform_indices = @transform_7, window_bounds = array<i64: 3, 4, 128>}, {transform_indices = @transform_8, window_bounds = array<i64: 8, 128>}]} {
    %c0 = arith.constant 0 : index
    %c0_0 = arith.constant 0 : index
    %0 = vector.load %arg1[%c0, %c0_0] : memref<8x128xf32, #tpu.memory_space<vmem>>, vector<8x128xf32>
    %c0_1 = arith.constant 0 : index
    %c0_2 = arith.constant 0 : index
    %1 = vector.load %arg5[%c0_1, %c0_2] : memref<5x128xf32, #tpu.memory_space<vmem>>, vector<5x128xf32>
    %2 = vector.extract_strided_slice %1 {offsets = [0, 0], sizes = [1, 128], strides = [1, 1]} : vector<5x128xf32> to vector<1x128xf32>
    %3 = vector.extract_strided_slice %1 {offsets = [1, 0], sizes = [1, 128], strides = [1, 1]} : vector<5x128xf32> to vector<1x128xf32>
    %4 = vector.extract_strided_slice %1 {offsets = [2, 0], sizes = [1, 128], strides = [1, 1]} : vector<5x128xf32> to vector<1x128xf32>
    %5 = vector.extract_strided_slice %1 {offsets = [3, 0], sizes = [1, 128], strides = [1, 1]} : vector<5x128xf32> to vector<1x128xf32>
    %6 = vector.extract_strided_slice %1 {offsets = [4, 0], sizes = [1, 128], strides = [1, 1]} : vector<5x128xf32> to vector<1x128xf32>
    %c0_3 = arith.constant 0 : index
    %c0_4 = arith.constant 0 : index
    %7 = vector.load %arg6[%c0_3, %c0_4] : memref<128x4xf32, #tpu.memory_space<vmem>>, vector<128x4xf32>
    %c0_5 = arith.constant 0 : index
    %c0_6 = arith.constant 0 : index
    %8 = vector.load %arg7[%c0_5, %c0_6] : memref<4x128xf32, #tpu.memory_space<vmem>>, vector<4x128xf32>
    %c0_7 = arith.constant 0 : index
    %c0_8 = arith.constant 0 : index
    %c0_9 = arith.constant 0 : index
    %9 = vector.load %arg8[%c0_7, %c0_8, %c0_9] : memref<3x4x128xf32, #tpu.memory_space<vmem>>, vector<1x4x128xf32>
    %10 = vector.shape_cast %9 : vector<1x4x128xf32> to vector<4x128xf32>
    %c1 = arith.constant 1 : index
    %c0_10 = arith.constant 0 : index
    %c0_11 = arith.constant 0 : index
    %11 = vector.load %arg8[%c1, %c0_10, %c0_11] : memref<3x4x128xf32, #tpu.memory_space<vmem>>, vector<1x4x128xf32>
    %12 = vector.shape_cast %11 : vector<1x4x128xf32> to vector<4x128xf32>
    %c2 = arith.constant 2 : index
    %c0_12 = arith.constant 0 : index
    %c0_13 = arith.constant 0 : index
    %13 = vector.load %arg8[%c2, %c0_12, %c0_13] : memref<3x4x128xf32, #tpu.memory_space<vmem>>, vector<1x4x128xf32>
    %14 = vector.shape_cast %13 : vector<1x4x128xf32> to vector<4x128xf32>
    %15 = arith.truncf %0 : vector<8x128xf32> to vector<8x128xbf16>
    %c0_14 = arith.constant 0 : index
    %c0_15 = arith.constant 0 : index
    %16 = vector.load %arg3[%c0_14, %c0_15] : memref<128x128xbf16, #tpu.memory_space<vmem>>, vector<128x128xbf16>
    %cst = arith.constant dense<0.000000e+00> : vector<8x128xf32>
    %17 = tpu.matmul %15, %16, %cst {dimension_numbers = #tpu.dot_dimension_numbers<[1], [0], [0], [1], [0, 0, 1, 1], [], []>} : vector<8x128xbf16>, vector<128x128xbf16>, vector<8x128xf32> -> vector<8x128xf32>
    %18 = vector.broadcast %2 : vector<1x128xf32> to vector<8x128xf32>
    %19 = arith.addf %17, %18 : vector<8x128xf32>
    %cst_16 = arith.constant dense<0.000000e+00> : vector<8x4xf32>
    %20 = tpu.matmul %19, %7, %cst_16 {dimension_numbers = #tpu.dot_dimension_numbers<[1], [0], [0], [1], [0, 0, 1, 1], [], []>} : vector<8x128xf32>, vector<128x4xf32>, vector<8x4xf32> -> vector<8x4xf32>
    %21 = arith.mulf %19, %19 : vector<8x128xf32>
    %cst_17 = arith.constant dense<0.000000e+00> : vector<8x4xf32>
    %22 = tpu.matmul %21, %7, %cst_17 {dimension_numbers = #tpu.dot_dimension_numbers<[1], [0], [0], [1], [0, 0, 1, 1], [], []>} : vector<8x128xf32>, vector<128x4xf32>, vector<8x4xf32> -> vector<8x4xf32>
    %23 = arith.mulf %20, %20 : vector<8x4xf32>
    %24 = arith.subf %22, %23 : vector<8x4xf32>
    %cst_18 = arith.constant 0.000000e+00 : f32
    %25 = vector.broadcast %cst_18 : f32 to vector<8x4xf32>
    %26 = arith.maximumf %24, %25 : vector<8x4xf32>
    %cst_19 = arith.constant 9.99999974E-6 : f32
    %27 = vector.broadcast %cst_19 : f32 to vector<8x4xf32>
    %28 = arith.addf %26, %27 : vector<8x4xf32>
    %29 = math.rsqrt %28 : vector<8x4xf32>
    %cst_20 = arith.constant dense<0.000000e+00> : vector<8x128xf32>
    %30 = tpu.matmul %20, %8, %cst_20 {dimension_numbers = #tpu.dot_dimension_numbers<[1], [0], [0], [1], [0, 0, 1, 1], [], []>} : vector<8x4xf32>, vector<4x128xf32>, vector<8x128xf32> -> vector<8x128xf32>
    %cst_21 = arith.constant dense<0.000000e+00> : vector<8x128xf32>
    %31 = tpu.matmul %29, %10, %cst_21 {dimension_numbers = #tpu.dot_dimension_numbers<[1], [0], [0], [1], [0, 0, 1, 1], [], []>} : vector<8x4xf32>, vector<4x128xf32>, vector<8x128xf32> -> vector<8x128xf32>
    %32 = arith.subf %19, %30 : vector<8x128xf32>
    %33 = arith.mulf %32, %31 : vector<8x128xf32>
    %34 = vector.broadcast %4 : vector<1x128xf32> to vector<8x128xf32>
    %35 = arith.addf %33, %34 : vector<8x128xf32>
    %cst_22 = arith.constant 0.000000e+00 : f32
    %36 = vector.broadcast %cst_22 : f32 to vector<8x128xf32>
    %37 = arith.maximumf %35, %36 : vector<8x128xf32>
    %38 = arith.truncf %37 : vector<8x128xf32> to vector<8x128xbf16>
    %c0_23 = arith.constant 0 : index
    %c0_24 = arith.constant 0 : index
    %39 = vector.load %arg4[%c0_23, %c0_24] : memref<128x128xbf16, #tpu.memory_space<vmem>>, vector<128x128xbf16>
    %cst_25 = arith.constant dense<0.000000e+00> : vector<8x128xf32>
    %40 = tpu.matmul %38, %39, %cst_25 {dimension_numbers = #tpu.dot_dimension_numbers<[1], [0], [0], [1], [0, 0, 1, 1], [], []>} : vector<8x128xbf16>, vector<128x128xbf16>, vector<8x128xf32> -> vector<8x128xf32>
    %41 = vector.broadcast %3 : vector<1x128xf32> to vector<8x128xf32>
    %42 = arith.addf %40, %41 : vector<8x128xf32>
    %c0_26 = arith.constant 0 : index
    %c0_27 = arith.constant 0 : index
    %43 = vector.load %arg2[%c0_26, %c0_27] : memref<8x128xf32, #tpu.memory_space<vmem>>, vector<8x128xf32>
    %44 = arith.addf %42, %43 : vector<8x128xf32>
    %cst_28 = arith.constant dense<0.000000e+00> : vector<8x4xf32>
    %45 = tpu.matmul %44, %7, %cst_28 {dimension_numbers = #tpu.dot_dimension_numbers<[1], [0], [0], [1], [0, 0, 1, 1], [], []>} : vector<8x128xf32>, vector<128x4xf32>, vector<8x4xf32> -> vector<8x4xf32>
    %46 = arith.mulf %44, %44 : vector<8x128xf32>
    %cst_29 = arith.constant dense<0.000000e+00> : vector<8x4xf32>
    %47 = tpu.matmul %46, %7, %cst_29 {dimension_numbers = #tpu.dot_dimension_numbers<[1], [0], [0], [1], [0, 0, 1, 1], [], []>} : vector<8x128xf32>, vector<128x4xf32>, vector<8x4xf32> -> vector<8x4xf32>
    %48 = arith.mulf %45, %45 : vector<8x4xf32>
    %49 = arith.subf %47, %48 : vector<8x4xf32>
    %cst_30 = arith.constant 0.000000e+00 : f32
    %50 = vector.broadcast %cst_30 : f32 to vector<8x4xf32>
    %51 = arith.maximumf %49, %50 : vector<8x4xf32>
    %cst_31 = arith.constant 9.99999974E-6 : f32
    %52 = vector.broadcast %cst_31 : f32 to vector<8x4xf32>
    %53 = arith.addf %51, %52 : vector<8x4xf32>
    %54 = math.rsqrt %53 : vector<8x4xf32>
    %cst_32 = arith.constant dense<0.000000e+00> : vector<8x128xf32>
    %55 = tpu.matmul %45, %8, %cst_32 {dimension_numbers = #tpu.dot_dimension_numbers<[1], [0], [0], [1], [0, 0, 1, 1], [], []>} : vector<8x4xf32>, vector<4x128xf32>, vector<8x128xf32> -> vector<8x128xf32>
    %cst_33 = arith.constant dense<0.000000e+00> : vector<8x128xf32>
    %56 = tpu.matmul %54, %12, %cst_33 {dimension_numbers = #tpu.dot_dimension_numbers<[1], [0], [0], [1], [0, 0, 1, 1], [], []>} : vector<8x4xf32>, vector<4x128xf32>, vector<8x128xf32> -> vector<8x128xf32>
    %57 = arith.subf %44, %55 : vector<8x128xf32>
    %58 = arith.mulf %57, %56 : vector<8x128xf32>
    %59 = vector.broadcast %5 : vector<1x128xf32> to vector<8x128xf32>
    %60 = arith.addf %58, %59 : vector<8x128xf32>
    %61 = arith.addf %60, %0 : vector<8x128xf32>
    %cst_34 = arith.constant 0.000000e+00 : f32
    %62 = vector.broadcast %cst_34 : f32 to vector<8x128xf32>
    %63 = arith.maximumf %61, %62 : vector<8x128xf32>
    %cst_35 = arith.constant dense<0.000000e+00> : vector<8x4xf32>
    %64 = tpu.matmul %63, %7, %cst_35 {dimension_numbers = #tpu.dot_dimension_numbers<[1], [0], [0], [1], [0, 0, 1, 1], [], []>} : vector<8x128xf32>, vector<128x4xf32>, vector<8x4xf32> -> vector<8x4xf32>
    %65 = arith.mulf %63, %63 : vector<8x128xf32>
    %cst_36 = arith.constant dense<0.000000e+00> : vector<8x4xf32>
    %66 = tpu.matmul %65, %7, %cst_36 {dimension_numbers = #tpu.dot_dimension_numbers<[1], [0], [0], [1], [0, 0, 1, 1], [], []>} : vector<8x128xf32>, vector<128x4xf32>, vector<8x4xf32> -> vector<8x4xf32>
    %67 = arith.mulf %64, %64 : vector<8x4xf32>
    %68 = arith.subf %66, %67 : vector<8x4xf32>
    %cst_37 = arith.constant 0.000000e+00 : f32
    %69 = vector.broadcast %cst_37 : f32 to vector<8x4xf32>
    %70 = arith.maximumf %68, %69 : vector<8x4xf32>
    %cst_38 = arith.constant 9.99999974E-6 : f32
    %71 = vector.broadcast %cst_38 : f32 to vector<8x4xf32>
    %72 = arith.addf %70, %71 : vector<8x4xf32>
    %73 = math.rsqrt %72 : vector<8x4xf32>
    %cst_39 = arith.constant dense<0.000000e+00> : vector<8x128xf32>
    %74 = tpu.matmul %64, %8, %cst_39 {dimension_numbers = #tpu.dot_dimension_numbers<[1], [0], [0], [1], [0, 0, 1, 1], [], []>} : vector<8x4xf32>, vector<4x128xf32>, vector<8x128xf32> -> vector<8x128xf32>
    %cst_40 = arith.constant dense<0.000000e+00> : vector<8x128xf32>
    %75 = tpu.matmul %73, %14, %cst_40 {dimension_numbers = #tpu.dot_dimension_numbers<[1], [0], [0], [1], [0, 0, 1, 1], [], []>} : vector<8x4xf32>, vector<4x128xf32>, vector<8x128xf32> -> vector<8x128xf32>
    %76 = arith.subf %63, %74 : vector<8x128xf32>
    %77 = arith.mulf %76, %75 : vector<8x128xf32>
    %78 = vector.broadcast %6 : vector<1x128xf32> to vector<8x128xf32>
    %79 = arith.addf %77, %78 : vector<8x128xf32>
    %c0_41 = arith.constant 0 : index
    %c0_42 = arith.constant 0 : index
    %80 = vector.load %arg9[%c0_41, %c0_42] : memref<8x128xf32, #tpu.memory_space<vmem>>, vector<8x128xf32>
    tpu.vector_store %arg9[%c0_41, %c0_42], %79 {strides = array<i32>} : memref<8x128xf32, #tpu.memory_space<vmem>>, vector<8x128xf32>,
    return
  }
  func.func @transform_0(%arg0: i32) -> (i32, i32) {
    %c0_i32 = arith.constant 0 : i32
    %c0_i32_0 = arith.constant 0 : i32
    return %arg0, %c0_i32 : i32, i32
  }
  func.func @transform_1(%arg0: i32) -> (i32, i32) {
    %c0_i32 = arith.constant 0 : i32
    %c0_i32_0 = arith.constant 0 : i32
    return %arg0, %c0_i32 : i32, i32
  }
  func.func @transform_2(%arg0: i32) -> (i32, i32) {
    %c0_i32 = arith.constant 0 : i32
    %c0_i32_0 = arith.constant 0 : i32
    %c0_i32_1 = arith.constant 0 : i32
    return %c0_i32, %c0_i32_0 : i32, i32
  }
  func.func @transform_3(%arg0: i32) -> (i32, i32) {
    %c0_i32 = arith.constant 0 : i32
    %c0_i32_0 = arith.constant 0 : i32
    %c0_i32_1 = arith.constant 0 : i32
    return %c0_i32, %c0_i32_0 : i32, i32
  }
  func.func @transform_4(%arg0: i32) -> (i32, i32) {
    %c0_i32 = arith.constant 0 : i32
    %c0_i32_0 = arith.constant 0 : i32
    %c0_i32_1 = arith.constant 0 : i32
    return %c0_i32, %c0_i32_0 : i32, i32
  }
  func.func @transform_5(%arg0: i32) -> (i32, i32) {
    %c0_i32 = arith.constant 0 : i32
    %c0_i32_0 = arith.constant 0 : i32
    %c0_i32_1 = arith.constant 0 : i32
    return %c0_i32, %c0_i32_0 : i32, i32
  }
  func.func @transform_6(%arg0: i32) -> (i32, i32) {
    %c0_i32 = arith.constant 0 : i32
    %c0_i32_0 = arith.constant 0 : i32
    %c0_i32_1 = arith.constant 0 : i32
    return %c0_i32, %c0_i32_0 : i32, i32
  }
  func.func @transform_7(%arg0: i32) -> (i32, i32, i32) {
    %c0_i32 = arith.constant 0 : i32
    %c0_i32_0 = arith.constant 0 : i32
    %c0_i32_1 = arith.constant 0 : i32
    %c0_i32_2 = arith.constant 0 : i32
    return %c0_i32, %c0_i32_0, %c0_i32_1 : i32, i32, i32
  }
  func.func @transform_8(%arg0: i32) -> (i32, i32) {
    %c0_i32 = arith.constant 0 : i32
    %c0_i32_0 = arith.constant 0 : i32
    return %arg0, %c0_i32 : i32, i32
  }
}

</mosaic_0001>

<llo_original>
// kernel: tpu_custom_call.1
$region0: #{tpu_custom_call.1}
  #allocation0 [shape = 'u32[]', space=smem, size = 0x4, offset = 0x4, fixed_abs, tag = 'smem constant byte address 0x4 - core index']
  #allocation1 [shape = 'u32[144,128]{1,0:T(1,128)}', space=vmem, size = 0x12000, scoped, tag = 'internal scratch']
  %s0 = inlined_call_operand.hbm [shape: f32[16,128], index: 0, kind: input, shape index: {}]
  %s1 = inlined_call_operand.hbm [shape: f32[16,128], index: 1, kind: input, shape index: {}]
  %s2 = inlined_call_operand.vmem [shape: bf16[128,128], index: 2, kind: input, shape index: {}]
  %s3 = inlined_call_operand.vmem [shape: bf16[128,128], index: 3, kind: input, shape index: {}]
  %s4 = inlined_call_operand.hbm [shape: f32[5,128], index: 4, kind: input, shape index: {}]
  %s5 = inlined_call_operand.vmem [shape: f32[128,4], index: 5, kind: input, shape index: {}]
  %s6 = inlined_call_operand.vmem [shape: f32[4,128], index: 6, kind: input, shape index: {}]
  %s7 = inlined_call_operand.vmem [shape: f32[3,4,128], index: 7, kind: input, shape index: {}]
  %s8 = inlined_call_operand.hbm [shape: f32[16,128], index: 8, kind: output, shape index: {}]
  %s9 = sld [smem:[#allocation0]]
  $region77: #{tpu_custom_call.1} parent=0
    _
  %s11 = ssub.s32 1, %s9
  %s12 = scalar_select 0, %s11, %s9
  $region1: #{tpu_custom_call.1} parent=0
    #allocation2 [shape = 'u8[8192]{0}', space=vmem, size = 0x2000, scoped, tag = 'input window, operand 0']
    #allocation3 [shape = 's32[2]{0}', space=sflag, size = 0x8, scoped, tag = 'scoped memory for tpu_custom_call.1']
    #allocation4 [shape = 's32[2]{0}', space=sflag, size = 0x8, scoped, tag = 'scoped memory for tpu_custom_call.1']
    #allocation5 [shape = 'u8[8192]{0}', space=vmem, size = 0x2000, scoped, tag = 'input window, operand 1']
    #allocation6 [shape = 's32[2]{0}', space=sflag, size = 0x8, scoped, tag = 'scoped memory for tpu_custom_call.1']
    #allocation7 [shape = 'u8[4096]{0}', space=vmem, size = 0x1000, scoped, tag = 'input window, operand 4, single buffered']
    #allocation8 [shape = 'u8[8192]{0}', space=vmem, size = 0x2000, scoped, tag = 'output window, operand 0']
    %13 = vsyncpa [#allocation3], 0
    %s14 = scalar_lea.sflag [#allocation3], 1
    %15 = vsyncpa %s14, 0
    %16 = vsyncpa [#allocation6], 0
    %s17 = scalar_lea.sflag [#allocation6], 1
    %18 = vsyncpa %s17, 0
    %19 = vsyncpa [#allocation4], 0
    %s20 = scalar_lea.sflag [#allocation4], 1
    %21 = vsyncpa %s20, 0
    loop: start=0, step=1, limit=4
    $region2: #{tpu_custom_call.1} parent=1 // loop_pre_header
      _
    $region3: #{tpu_custom_call.1} parent=1 // loop_header
      %s23 = sphi 0, %s27
      %p24 = scmp.ge.s32.totalorder %s23, 4
      %s33 = sphi 0, %s35
      %s36 = sphi 0, %s33
      %s37 = sphi 0, %s36
      %s53 = sphi 0, %s37
      %s59 = sphi 0, %s61
      %s62 = sphi 0, %s59
      %s63 = sphi 0, %s62
      %s79 = sphi 0, %s63
      %s83 = sphi 0, %s83
      %s85 = sphi 0, %s83
      %s86 = sphi 0, %s85
      %s100 = sphi 0, %s86
      %s104 = sphi 0, %s104
      %s106 = sphi 0, %s104
      %s107 = sphi 0, %s106
      %s121 = sphi 0, %s107
      %s125 = sphi 0, %s125
      %s127 = sphi 0, %s125
      %s128 = sphi 0, %s127
      %s142 = sphi 0, %s128
      %s146 = sphi 0, %s146
      %s148 = sphi 0, %s146
      %s149 = sphi 0, %s148
      %s163 = sphi 0, %s149
      %s167 = sphi 0, %s167
      %s169 = sphi 0, %s167
      %s170 = sphi 0, %s169
      %s184 = sphi 0, %s170
      %s188 = sphi 0, %s188
      %s190 = sphi 0, %s188
      %s191 = sphi 0, %s190
      %s205 = sphi 0, %s191
      %s211 = sphi 0, %s213
      %s214 = sphi 0, %s211
      %s215 = sphi 0, %s214
      %s231 = sphi 0, %s215
    $region4: #{tpu_custom_call.1} parent=1 // loop_header_branch
      %26 = sbr.rel (%p24) target = $region8
    $region5: #{tpu_custom_call.1} parent=1 // loop_body
      %s28 = ssub.s32 %s23, 1
      %s29 = ssub.s32 %s23, 2
      %s30 = sadd.s32 %s23, 1
      %s31 = ssub.s32 %s23, %s30
      %p32 = scmp.eq.s32.totalorder %s31, 0
      %s34 = sadd.s32 %s33, 1
      %s35 = scalar_select %p32, %s33, %s34
      %p38 = pneg %p32
      %p39 = scmp.eq.s32.totalorder %s23, 1
      %p40 = por %p38, %p39
      %p41 = scmp.ne.s32.totalorder %s33, %s36
      %p42 = scmp.eq.s32.totalorder %s23, 0
      %p43 = por %p41, %p42
      %p44 = scmp.ne.s32.totalorder %s33, %s36
      %p45 = scmp.eq.s32.totalorder %s28, 1
      %p46 = por %p44, %p45
      %p47 = scmp.ne.s32.totalorder %s36, %s37
      %p48 = scmp.eq.s32.totalorder %s28, 0
      %p49 = por %p47, %p48
      %p50 = scmp.ne.s32.totalorder %s36, %s37
      %p51 = scmp.eq.s32.totalorder %s29, 1
      %p52 = por %p50, %p51
      %p54 = scmp.ne.s32.totalorder %s37, %s53
      %p55 = scmp.eq.s32.totalorder %s29, 0
      %p56 = por %p54, %p55
      %s57 = ssub.s32 %s23, %s30
      %p58 = scmp.eq.s32.totalorder %s57, 0
      %s60 = sadd.s32 %s59, 1
      %s61 = scalar_select %p58, %s59, %s60
      %p64 = pneg %p58
      %p65 = scmp.eq.s32.totalorder %s23, 1
      %p66 = por %p64, %p65
      %p67 = scmp.ne.s32.totalorder %s59, %s62
      %p68 = scmp.eq.s32.totalorder %s23, 0
      %p69 = por %p67, %p68
      %p70 = scmp.ne.s32.totalorder %s59, %s62
      %p71 = scmp.eq.s32.totalorder %s28, 1
      %p72 = por %p70, %p71
      %p73 = scmp.ne.s32.totalorder %s62, %s63
      %p74 = scmp.eq.s32.totalorder %s28, 0
      %p75 = por %p73, %p74
      %p76 = scmp.ne.s32.totalorder %s62, %s63
      %p77 = scmp.eq.s32.totalorder %s29, 1
      %p78 = por %p76, %p77
      %p80 = scmp.ne.s32.totalorder %s63, %s79
      %p81 = scmp.eq.s32.totalorder %s29, 0
      %p82 = por %p80, %p81
      %s84 = sadd.s32 %s83, 1
      %p87 = scmp.eq.s32.totalorder %s23, 1
      %p88 = scmp.ne.s32.totalorder %s83, %s85
      %p89 = scmp.eq.s32.totalorder %s23, 0
      %p90 = por %p88, %p89
      %p91 = scmp.ne.s32.totalorder %s83, %s85
      %p92 = scmp.eq.s32.totalorder %s28, 1
      %p93 = por %p91, %p92
      %p94 = scmp.ne.s32.totalorder %s85, %s86
      %p95 = scmp.eq.s32.totalorder %s28, 0
      %p96 = por %p94, %p95
      %p97 = scmp.ne.s32.totalorder %s85, %s86
      %p98 = scmp.eq.s32.totalorder %s29, 1
      %p99 = por %p97, %p98
      %p101 = scmp.ne.s32.totalorder %s86, %s100
      %p102 = scmp.eq.s32.totalorder %s29, 0
      %p103 = por %p101, %p102
      %s105 = sadd.s32 %s104, 1
      %p108 = scmp.eq.s32.totalorder %s23, 1
      %p109 = scmp.ne.s32.totalorder %s104, %s106
      %p110 = scmp.eq.s32.totalorder %s23, 0
      %p111 = por %p109, %p110
      %p112 = scmp.ne.s32.totalorder %s104, %s106
      %p113 = scmp.eq.s32.totalorder %s28, 1
      %p114 = por %p112, %p113
      %p115 = scmp.ne.s32.totalorder %s106, %s107
      %p116 = scmp.eq.s32.totalorder %s28, 0
      %p117 = por %p115, %p116
      %p118 = scmp.ne.s32.totalorder %s106, %s107
      %p119 = scmp.eq.s32.totalorder %s29, 1
      %p120 = por %p118, %p119
      %p122 = scmp.ne.s32.totalorder %s107, %s121
      %p123 = scmp.eq.s32.totalorder %s29, 0
      %p124 = por %p122, %p123
      %s126 = sadd.s32 %s125, 1
      %p129 = scmp.eq.s32.totalorder %s23, 1
      %p130 = scmp.ne.s32.totalorder %s125, %s127
      %p131 = scmp.eq.s32.totalorder %s23, 0
      %p132 = por %p130, %p131
      %p133 = scmp.ne.s32.totalorder %s125, %s127
      %p134 = scmp.eq.s32.totalorder %s28, 1
      %p135 = por %p133, %p134
      %p136 = scmp.ne.s32.totalorder %s127, %s128
      %p137 = scmp.eq.s32.totalorder %s28, 0
      %p138 = por %p136, %p137
      %p139 = scmp.ne.s32.totalorder %s127, %s128
      %p140 = scmp.eq.s32.totalorder %s29, 1
      %p141 = por %p139, %p140
      %p143 = scmp.ne.s32.totalorder %s128, %s142
      %p144 = scmp.eq.s32.totalorder %s29, 0
      %p145 = por %p143, %p144
      %s147 = sadd.s32 %s146, 1
      %p150 = scmp.eq.s32.totalorder %s23, 1
      %p151 = scmp.ne.s32.totalorder %s146, %s148
      %p152 = scmp.eq.s32.totalorder %s23, 0
      %p153 = por %p151, %p152
      %p154 = scmp.ne.s32.totalorder %s146, %s148
      %p155 = scmp.eq.s32.totalorder %s28, 1
      %p156 = por %p154, %p155
      %p157 = scmp.ne.s32.totalorder %s148, %s149
      %p158 = scmp.eq.s32.totalorder %s28, 0
      %p159 = por %p157, %p158
      %p160 = scmp.ne.s32.totalorder %s148, %s149
      %p161 = scmp.eq.s32.totalorder %s29, 1
      %p162 = por %p160, %p161
      %p164 = scmp.ne.s32.totalorder %s149, %s163
      %p165 = scmp.eq.s32.totalorder %s29, 0
      %p166 = por %p164, %p165
      %s168 = sadd.s32 %s167, 1
      %p171 = scmp.eq.s32.totalorder %s23, 1
      %p172 = scmp.ne.s32.totalorder %s167, %s169
      %p173 = scmp.eq.s32.totalorder %s23, 0
      %p174 = por %p172, %p173
      %p175 = scmp.ne.s32.totalorder %s167, %s169
      %p176 = scmp.eq.s32.totalorder %s28, 1
      %p177 = por %p175, %p176
      %p178 = scmp.ne.s32.totalorder %s169, %s170
      %p179 = scmp.eq.s32.totalorder %s28, 0
      %p180 = por %p178, %p179
      %p181 = scmp.ne.s32.totalorder %s169, %s170
      %p182 = scmp.eq.s32.totalorder %s29, 1
      %p183 = por %p181, %p182
      %p185 = scmp.ne.s32.totalorder %s170, %s184
      %p186 = scmp.eq.s32.totalorder %s29, 0
      %p187 = por %p185, %p186
      %s189 = sadd.s32 %s188, 1
      %p192 = scmp.eq.s32.totalorder %s23, 1
      %p193 = scmp.ne.s32.totalorder %s188, %s190
      %p194 = scmp.eq.s32.totalorder %s23, 0
      %p195 = por %p193, %p194
      %p196 = scmp.ne.s32.totalorder %s188, %s190
      %p197 = scmp.eq.s32.totalorder %s28, 1
      %p198 = por %p196, %p197
      %p199 = scmp.ne.s32.totalorder %s190, %s191
      %p200 = scmp.eq.s32.totalorder %s28, 0
      %p201 = por %p199, %p200
      %p202 = scmp.ne.s32.totalorder %s190, %s191
      %p203 = scmp.eq.s32.totalorder %s29, 1
      %p204 = por %p202, %p203
      %p206 = scmp.ne.s32.totalorder %s191, %s205
      %p207 = scmp.eq.s32.totalorder %s29, 0
      %p208 = por %p206, %p207
      %s209 = ssub.s32 %s23, %s30
      %p210 = scmp.eq.s32.totalorder %s209, 0
      %s212 = sadd.s32 %s211, 1
      %s213 = scalar_select %p210, %s211, %s212
      %p216 = pneg %p210
      %p217 = scmp.eq.s32.totalorder %s23, 1
      %p218 = por %p216, %p217
      %p219 = scmp.ne.s32.totalorder %s211, %s214
      %p220 = scmp.eq.s32.totalorder %s23, 0
      %p221 = por %p219, %p220
      %p222 = scmp.ne.s32.totalorder %s211, %s214
      %p223 = scmp.eq.s32.totalorder %s28, 1
      %p224 = por %p222, %p223
      %p225 = scmp.ne.s32.totalorder %s214, %s215
      %p226 = scmp.eq.s32.totalorder %s28, 0
      %p227 = por %p225, %p226
      %p228 = scmp.ne.s32.totalorder %s214, %s215
      %p229 = scmp.eq.s32.totalorder %s29, 1
      %p230 = por %p228, %p229
      %p232 = scmp.ne.s32.totalorder %s215, %s231
      %p233 = scmp.eq.s32.totalorder %s29, 0
      %p234 = por %p232, %p233
      %p235 = scmp.le.s32.totalorder 1, %s23
      %p236 = scmp.lt.s32.totalorder %s23, 3
      %p237 = pnand %p235, %p236
      %p238 = pneg %p237
      // Predicated region
      $region9: #{tpu_custom_call.1} parent=5 // pred_check
        _
      $region10: #{tpu_custom_call.1} parent=5 // pred_check_branch
        %240 = sbr.rel (%p237) target = $region12
      $region11: #{tpu_custom_call.1} parent=5 // pred_region
        %s241 = ssub.s32 %s23, 1
        // Predicated region
        $region13: #{tpu_custom_call.1} parent=11 // pred_check
          %p242 = pneg %p96
        $region14: #{tpu_custom_call.1} parent=11 // pred_check_branch
          %244 = sbr.rel (%p242) target = $region16
        $region15: #{tpu_custom_call.1} parent=11 // pred_region
          _
        $region16: #{tpu_custom_call.1} parent=11 // pred_fallthru
          _
        // Predicated region
        $region17: #{tpu_custom_call.1} parent=11 // pred_check
          %p245 = pneg %p117
        $region18: #{tpu_custom_call.1} parent=11 // pred_check_branch
          %247 = sbr.rel (%p245) target = $region20
        $region19: #{tpu_custom_call.1} parent=11 // pred_region
          _
        $region20: #{tpu_custom_call.1} parent=11 // pred_fallthru
          _
        // Predicated region
        $region21: #{tpu_custom_call.1} parent=11 // pred_check
          %p248 = pneg %p138
        $region22: #{tpu_custom_call.1} parent=11 // pred_check_branch
          %250 = sbr.rel (%p248) target = $region24
        $region23: #{tpu_custom_call.1} parent=11 // pred_region
          %s252 = ssub.s32 128, 128
          %253 = vsyncadd [#allocation6], %s252
          %s255 = sshll.u32 [#allocation7], 4
          %s256 = int_to_ptr.vmem [resolvable:$true] %s255
          %258 = dma.hbm_to_vmem [thread:$0]  %s4, 128, %s256, [#allocation6]
        $region24: #{tpu_custom_call.1} parent=11 // pred_fallthru
          _
        // Predicated region
        $region25: #{tpu_custom_call.1} parent=11 // pred_check
          %p259 = pneg %p159
        $region26: #{tpu_custom_call.1} parent=11 // pred_check_branch
          %261 = sbr.rel (%p259) target = $region28
        $region27: #{tpu_custom_call.1} parent=11 // pred_region
          _
        $region28: #{tpu_custom_call.1} parent=11 // pred_fallthru
          _
        // Predicated region
        $region29: #{tpu_custom_call.1} parent=11 // pred_check
          %p262 = pneg %p180
        $region30: #{tpu_custom_call.1} parent=11 // pred_check_branch
          %264 = sbr.rel (%p262) target = $region32
        $region31: #{tpu_custom_call.1} parent=11 // pred_region
          _
        $region32: #{tpu_custom_call.1} parent=11 // pred_fallthru
          _
        // Predicated region
        $region33: #{tpu_custom_call.1} parent=11 // pred_check
          %p265 = pneg %p201
        $region34: #{tpu_custom_call.1} parent=11 // pred_check_branch
          %267 = sbr.rel (%p265) target = $region36
        $region35: #{tpu_custom_call.1} parent=11 // pred_region
          _
        $region36: #{tpu_custom_call.1} parent=11 // pred_fallthru
          _
      $region12: #{tpu_custom_call.1} parent=5 // pred_fallthru
        _
      %p268 = scmp.lt.s32.totalorder %s23, 2
      // Predicated region
      $region37: #{tpu_custom_call.1} parent=5 // pred_check
        %p269 = pneg %p268
      $region38: #{tpu_custom_call.1} parent=5 // pred_check_branch
        %271 = sbr.rel (%p269) target = $region40
      $region39: #{tpu_custom_call.1} parent=5 // pred_region
        // Predicated region
        $region41: #{tpu_custom_call.1} parent=39 // pred_check
          %p272 = pneg %p43
        $region42: #{tpu_custom_call.1} parent=39 // pred_check_branch
          %274 = sbr.rel (%p272) target = $region44
        $region43: #{tpu_custom_call.1} parent=39 // pred_region
          %s275 = sand.u32 %s33, 1
          %s276 = scalar_lea.sflag [#allocation3], %s275
          %s277 = sand.u32 %s33, 1
          %s278 = smul.addr %s277, 8
          %s279 = scalar_lea.vmem [#allocation2], %s278
          %s281 = ssub.s32 128, 128
          %282 = vsyncadd %s276, %s281
          %s283 = smul.addr %s23, 128
          %s284 = scalar_lea.hbm %s0, %s283
          %s286 = sshll.u32 %s279, 4
          %s287 = int_to_ptr.vmem [resolvable:$true] %s286
          %289 = dma.hbm_to_vmem [thread:$0]  %s284, 128, %s287, %s276
        $region44: #{tpu_custom_call.1} parent=39 // pred_fallthru
          _
        // Predicated region
        $region45: #{tpu_custom_call.1} parent=39 // pred_check
          %p290 = pneg %p69
        $region46: #{tpu_custom_call.1} parent=39 // pred_check_branch
          %292 = sbr.rel (%p290) target = $region48
        $region47: #{tpu_custom_call.1} parent=39 // pred_region
          %s293 = sand.u32 %s23, 1
          %s294 = scalar_lea.sflag [#allocation6], %s293
          %s295 = sand.u32 %s59, 1
          %s296 = smul.addr %s295, 8
          %s297 = scalar_lea.vmem [#allocation5], %s296
          %s299 = ssub.s32 128, 128
          %300 = vsyncadd %s294, %s299
          %s301 = smul.addr %s23, 128
          %s302 = scalar_lea.hbm %s1, %s301
          %s304 = sshll.u32 %s297, 4
          %s305 = int_to_ptr.vmem [resolvable:$true] %s304
          %307 = dma.hbm_to_vmem [thread:$0]  %s302, 128, %s305, %s294
        $region48: #{tpu_custom_call.1} parent=39 // pred_fallthru
          _
      $region40: #{tpu_custom_call.1} parent=5 // pred_fallthru
        _
      %p308 = scmp.le.s32.totalorder 1, %s23
      %p309 = scmp.lt.s32.totalorder %s23, 3
      %p310 = pnand %p308, %p309
      %p311 = pneg %p310
      // Predicated region
      $region49: #{tpu_custom_call.1} parent=5 // pred_check
        _
      $region50: #{tpu_custom_call.1} parent=5 // pred_check_branch
        %313 = sbr.rel (%p310) target = $region52
      $region51: #{tpu_custom_call.1} parent=5 // pred_region
        %s314 = ssub.s32 %s23, 1
        %s315 = sand.u32 %s36, 1
        %s316 = scalar_lea.sflag [#allocation3], %s315
        %s317 = sand.u32 %s36, 1
        %s318 = smul.addr %s317, 8
        %s319 = scalar_lea.vmem [#allocation2], %s318
        // Predicated region
        $region53: #{tpu_custom_call.1} parent=51 // pred_check
          %p320 = pneg %p49
        $region54: #{tpu_custom_call.1} parent=51 // pred_check_branch
          %322 = sbr.rel (%p320) target = $region56
        $region55: #{tpu_custom_call.1} parent=51 // pred_region
          %323 = dma.done %s316, 128
        $region56: #{tpu_custom_call.1} parent=51 // pred_fallthru
          _
        %s324 = sand.u32 %s28, 1
        %s325 = scalar_lea.sflag [#allocation6], %s324
        %s326 = sand.u32 %s62, 1
        %s327 = smul.addr %s326, 8
        %s328 = scalar_lea.vmem [#allocation5], %s327
        // Predicated region
        $region57: #{tpu_custom_call.1} parent=51 // pred_check
          %p329 = pneg %p75
        $region58: #{tpu_custom_call.1} parent=51 // pred_check_branch
          %331 = sbr.rel (%p329) target = $region60
        $region59: #{tpu_custom_call.1} parent=51 // pred_region
          %332 = dma.done %s325, 128
        $region60: #{tpu_custom_call.1} parent=51 // pred_fallthru
          _
        // Predicated region
        $region61: #{tpu_custom_call.1} parent=51 // pred_check
          %p333 = pneg %p138
        $region62: #{tpu_custom_call.1} parent=51 // pred_check_branch
          %335 = sbr.rel (%p333) target = $region64
        $region63: #{tpu_custom_call.1} parent=51 // pred_region
          %336 = dma.done [#allocation6], 128
        $region64: #{tpu_custom_call.1} parent=51 // pred_fallthru
          _
        %s337 = sand.u32 %s36, 1
        %s338 = scalar_lea.sflag [#allocation3], %s337
        %s339 = sand.u32 %s36, 1
        %s340 = smul.addr %s339, 8
        %s341 = scalar_lea.vmem [#allocation2], %s340
        %p342 = pneg %p49
        %p343 = pneg %p46
        %s344 = sand.u32 %s28, 1
        %s345 = scalar_lea.sflag [#allocation6], %s344
        %s346 = sand.u32 %s62, 1
        %s347 = smul.addr %s346, 8
        %s348 = scalar_lea.vmem [#allocation5], %s347
        %p349 = pneg %p75
        %p350 = pneg %p72
        %p351 = pneg %p96
        %p352 = pneg %p93
        %p353 = pneg %p117
        %p354 = pneg %p114
        %p355 = pneg %p138
        %p356 = pneg %p135
        %p357 = pneg %p159
        %p358 = pneg %p156
        %p359 = pneg %p180
        %p360 = pneg %p177
        %p361 = pneg %p201
        %p362 = pneg %p198
        %p363 = pneg %p227
        %p364 = pneg %p224
        %s365 = sand.u32 %s214, 1
        %s366 = scalar_lea.sflag [#allocation4], %s365
        %s367 = sand.u32 %s214, 1
        %s368 = smul.addr %s367, 8
        %s369 = scalar_lea.vmem [#allocation8], %s368
        %v371 = vld [vmem:[%s319] sm:$0xff]
        %v372 = vld [vmem:[#allocation7] sm:$0x1f]
        %v373 = vld [vmem:[%s5] sm:$0xff]
        %v374 = vld [vmem:[%s5 + $0x8] sm:$0xff]
        %v375 = vld [vmem:[%s5 + $0x10] sm:$0xff]
        %v376 = vld [vmem:[%s5 + $0x18] sm:$0xff]
        %v377 = vld [vmem:[%s5 + $0x20] sm:$0xff]
        %v378 = vld [vmem:[%s5 + $0x28] sm:$0xff]
        %v379 = vld [vmem:[%s5 + $0x30] sm:$0xff]
        %v380 = vld [vmem:[%s5 + $0x38] sm:$0xff]
        %v381 = vld [vmem:[%s5 + $0x40] sm:$0xff]
        %v382 = vld [vmem:[%s5 + $0x48] sm:$0xff]
        %v383 = vld [vmem:[%s5 + $0x50] sm:$0xff]
        %v384 = vld [vmem:[%s5 + $0x58] sm:$0xff]
        %v385 = vld [vmem:[%s5 + $0x60] sm:$0xff]
        %v386 = vld [vmem:[%s5 + $0x68] sm:$0xff]
        %v387 = vld [vmem:[%s5 + $0x70] sm:$0xff]
        %v388 = vld [vmem:[%s5 + $0x78] sm:$0xff]
        %v389 = vld [vmem:[%s6] sm:$0xf]
        %v390 = vld [vmem:[%s7] sm:$0xf]
        %s391 = scalar_lea.vmem %s7, 4
        %v392 = vld [vmem:[%s391] sm:$0xf]
        %s393 = scalar_lea.vmem %s7, 8
        %v394 = vld [vmem:[%s393] sm:$0xf]
        %v395 = vpack.c.bf16 %v371, %v371
        %v396 = vld [vmem:[%s2] sm:$0xf]
        %v397 = vld [vmem:[%s2 + $0x4] sm:$0xf]
        %v398 = vld [vmem:[%s2 + $0x8] sm:$0xf]
        %v399 = vld [vmem:[%s2 + $0xc] sm:$0xf]
        %v400 = vld [vmem:[%s2 + $0x10] sm:$0xf]
        %v401 = vld [vmem:[%s2 + $0x14] sm:$0xf]
        %v402 = vld [vmem:[%s2 + $0x18] sm:$0xf]
        %v403 = vld [vmem:[%s2 + $0x1c] sm:$0xf]
        %v404 = vld [vmem:[%s2 + $0x20] sm:$0xf]
        %v405 = vld [vmem:[%s2 + $0x24] sm:$0xf]
        %v406 = vld [vmem:[%s2 + $0x28] sm:$0xf]
        %v407 = vld [vmem:[%s2 + $0x2c] sm:$0xf]
        %v408 = vld [vmem:[%s2 + $0x30] sm:$0xf]
        %v409 = vld [vmem:[%s2 + $0x34] sm:$0xf]
        %v410 = vld [vmem:[%s2 + $0x38] sm:$0xf]
        %v411 = vld [vmem:[%s2 + $0x3c] sm:$0xf]
        %v412 = vlaneseq
        %v413 = vshrl.u32 %v412, 7
        %v414 = vsub.s32 0, %v413
        %v415 = vrot.slane %v372, %v414
        %v432 = vunpack.c.l.b16 %v396
        %v433 = vunpack.c.l.b16 %v397
        %v434 = vunpack.c.l.b16 %v398
        %v435 = vunpack.c.l.b16 %v399
        %v436 = vunpack.c.l.b16 %v400
        %v437 = vunpack.c.l.b16 %v401
        %v438 = vunpack.c.l.b16 %v402
        %v439 = vunpack.c.l.b16 %v403
        %v440 = vunpack.c.l.b16 %v404
        %v441 = vunpack.c.l.b16 %v405
        %v442 = vunpack.c.l.b16 %v406
        %v443 = vunpack.c.l.b16 %v407
        %v444 = vunpack.c.l.b16 %v408
        %v445 = vunpack.c.l.b16 %v409
        %v446 = vunpack.c.l.b16 %v410
        %v447 = vunpack.c.l.b16 %v411
        %v448 = vpack.c.b16 %v433, %v432
        %v449 = vpack.c.b16 %v435, %v434
        %v450 = vpack.c.b16 %v437, %v436
        %v451 = vpack.c.b16 %v439, %v438
        %v452 = vpack.c.b16 %v441, %v440
        %v453 = vpack.c.b16 %v443, %v442
        %v454 = vpack.c.b16 %v445, %v444
        %v455 = vpack.c.b16 %v447, %v446
        %464 = vmatprep.subr.bf16.mxu0 0
        %465 = vmatpush1.bf16.msra.mxu0 %v448
        %466 = vmatprep.subr.bf16.mxu0 0
        %467 = vmatpush1.bf16.msra.mxu0 %v449
        %468 = vmatprep.subr.bf16.mxu0 0
        %469 = vmatpush1.bf16.msra.mxu0 %v450
        %470 = vmatprep.subr.bf16.mxu0 0
        %471 = vmatpush1.bf16.msra.mxu0 %v451
        %472 = vmatprep.subr.bf16.mxu0 0
        %473 = vmatpush1.bf16.msra.mxu0 %v452
        %474 = vmatprep.subr.bf16.mxu0 0
        %475 = vmatpush1.bf16.msra.mxu0 %v453
        %476 = vmatprep.subr.bf16.mxu0 0
        %477 = vmatpush1.bf16.msra.mxu0 %v454
        %478 = vmatprep.subr.bf16.mxu0 0
        %479 = vmatpush1.bf16.msra.mxu0 %v455
        %480 = vmatprep.subr.bf16.mxu0 0
        %481 = vmatpush1.bf16.msra.mxu0 0
        %482 = vmatprep.subr.bf16.mxu0 0
        %483 = vmatpush1.bf16.msra.mxu0 0
        %484 = vmatprep.subr.bf16.mxu0 0
        %485 = vmatpush1.bf16.msra.mxu0 0
        %486 = vmatprep.subr.bf16.mxu0 0
        %487 = vmatpush1.bf16.msra.mxu0 0
        %488 = vmatprep.subr.bf16.mxu0 0
        %489 = vmatpush1.bf16.msra.mxu0 0
        %490 = vmatprep.subr.bf16.mxu0 0
        %491 = vmatpush1.bf16.msra.mxu0 0
        %492 = vmatprep.subr.bf16.mxu0 0
        %493 = vmatpush1.bf16.msra.mxu0 0
        %494 = vmatprep.subr.bf16.mxu0 0
        %495 = vmatpush1.bf16.msra.mxu0 0
        %496 = vmatprep.mubr.bf16.mxu0 0
        %497 = vmatmul.mubr.bf16.gmra.mrb[0].mxu0 %v395
        %v498 = vpop.f32.mrb[0].mxu0
        %v499 = vadd.f32 %v415, %v498
        %v500 = vpop.f32.mrb[0].mxu0
        %v501 = vpop.f32.mrb[0].mxu0
        %v502 = vpop.f32.mrb[0].mxu0
        %503 = vdwg.mxu0
        %504 = vmatprep.subr.mxu0 0.0
        %505 = vmatpush1.msra.mxu0 %v373
        %506 = vmatprep.subr.mxu0 0.0
        %507 = vmatpush1.msra.mxu0 %v374
        %508 = vmatprep.subr.mxu0 0.0
        %509 = vmatpush1.msra.mxu0 %v375
        %510 = vmatprep.subr.mxu0 0.0
        %511 = vmatpush1.msra.mxu0 %v376
        %512 = vmatprep.subr.mxu0 0.0
        %513 = vmatpush1.msra.mxu0 %v377
        %514 = vmatprep.subr.mxu0 0.0
        %515 = vmatpush1.msra.mxu0 %v378
        %516 = vmatprep.subr.mxu0 0.0
        %517 = vmatpush1.msra.mxu0 %v379
        %518 = vmatprep.subr.mxu0 0.0
        %519 = vmatpush1.msra.mxu0 %v380
        %520 = vmatprep.subr.mxu0 0.0
        %521 = vmatpush1.msra.mxu0 %v381
        %522 = vmatprep.subr.mxu0 0.0
        %523 = vmatpush1.msra.mxu0 %v382
        %524 = vmatprep.subr.mxu0 0.0
        %525 = vmatpush1.msra.mxu0 %v383
        %526 = vmatprep.subr.mxu0 0.0
        %527 = vmatpush1.msra.mxu0 %v384
        %528 = vmatprep.subr.mxu0 0.0
        %529 = vmatpush1.msra.mxu0 %v385
        %530 = vmatprep.subr.mxu0 0.0
        %531 = vmatpush1.msra.mxu0 %v386
        %532 = vmatprep.subr.mxu0 0.0
        %533 = vmatpush1.msra.mxu0 %v387
        %534 = vmatprep.subr.mxu0 0.0
        %535 = vmatpush1.msra.mxu0 %v388
        %536 = vmatprep.subr.mxu0 0.0
        %537 = vmatpush1.msra.mxu0 0.0
        %538 = vmatprep.subr.mxu0 0.0
        %539 = vmatpush1.msra.mxu0 0.0
        %540 = vmatprep.subr.mxu0 0.0
        %541 = vmatpush1.msra.mxu0 0.0
        %542 = vmatprep.subr.mxu0 0.0
        %543 = vmatpush1.msra.mxu0 0.0
        %544 = vmatprep.subr.mxu0 0.0
        %545 = vmatpush1.msra.mxu0 0.0
        %546 = vmatprep.subr.mxu0 0.0
        %547 = vmatpush1.msra.mxu0 0.0
        %548 = vmatprep.subr.mxu0 0.0
        %549 = vmatpush1.msra.mxu0 0.0
        %550 = vmatprep.subr.mxu0 0.0
        %551 = vmatpush1.msra.mxu0 0.0
        %552 = vmatprep.subr.mxu0 0.0
        %553 = vmatpush1.msra.mxu0 0.0
        %554 = vmatprep.subr.mxu0 0.0
        %555 = vmatpush1.msra.mxu0 0.0
        %556 = vmatprep.subr.mxu0 0.0
        %557 = vmatpush1.msra.mxu0 0.0
        %558 = vmatprep.subr.mxu0 0.0
        %559 = vmatpush1.msra.mxu0 0.0
        %560 = vmatprep.subr.mxu0 0.0
        %561 = vmatpush1.msra.mxu0 0.0
        %562 = vmatprep.subr.mxu0 0.0
        %563 = vmatpush1.msra.mxu0 0.0
        %564 = vmatprep.subr.mxu0 0.0
        %565 = vmatpush1.msra.mxu0 0.0
        %566 = vmatprep.subr.mxu0 0.0
        %567 = vmatpush1.msra.mxu0 0.0
        %568 = vmatprep.mubr.f32.mxu0 0.0
        %569 = vmatmul.mubr.f32.gmra.mrb[0].mxu0 %v499
        %v570 = vpop.f32.mrb[0].mxu0
        %v571 = vadd.f32 0.0, %v570
        %v572 = vpop.f32.mrb[0].mxu0
        %573 = vdwg.mxu0
        %v574 = vmul.f32 %v499, %v499
        %575 = vmatprep.subr.mxu0 0.0
        %576 = vmatpush1.msra.mxu0 %v373
        %577 = vmatprep.subr.mxu0 0.0
        %578 = vmatpush1.msra.mxu0 %v374
        %579 = vmatprep.subr.mxu0 0.0
        %580 = vmatpush1.msra.mxu0 %v375
        %581 = vmatprep.subr.mxu0 0.0
        %582 = vmatpush1.msra.mxu0 %v376
        %583 = vmatprep.subr.mxu0 0.0
        %584 = vmatpush1.msra.mxu0 %v377
        %585 = vmatprep.subr.mxu0 0.0
        %586 = vmatpush1.msra.mxu0 %v378
        %587 = vmatprep.subr.mxu0 0.0
        %588 = vmatpush1.msra.mxu0 %v379
        %589 = vmatprep.subr.mxu0 0.0
        %590 = vmatpush1.msra.mxu0 %v380
        %591 = vmatprep.subr.mxu0 0.0
        %592 = vmatpush1.msra.mxu0 %v381
        %593 = vmatprep.subr.mxu0 0.0
        %594 = vmatpush1.msra.mxu0 %v382
        %595 = vmatprep.subr.mxu0 0.0
        %596 = vmatpush1.msra.mxu0 %v383
        %597 = vmatprep.subr.mxu0 0.0
        %598 = vmatpush1.msra.mxu0 %v384
        %599 = vmatprep.subr.mxu0 0.0
        %600 = vmatpush1.msra.mxu0 %v385
        %601 = vmatprep.subr.mxu0 0.0
        %602 = vmatpush1.msra.mxu0 %v386
        %603 = vmatprep.subr.mxu0 0.0
        %604 = vmatpush1.msra.mxu0 %v387
        %605 = vmatprep.subr.mxu0 0.0
        %606 = vmatpush1.msra.mxu0 %v388
        %607 = vmatprep.subr.mxu0 0.0
        %608 = vmatpush1.msra.mxu0 0.0
        %609 = vmatprep.subr.mxu0 0.0
        %610 = vmatpush1.msra.mxu0 0.0
        %611 = vmatprep.subr.mxu0 0.0
        %612 = vmatpush1.msra.mxu0 0.0
        %613 = vmatprep.subr.mxu0 0.0
        %614 = vmatpush1.msra.mxu0 0.0
        %615 = vmatprep.subr.mxu0 0.0
        %616 = vmatpush1.msra.mxu0 0.0
        %617 = vmatprep.subr.mxu0 0.0
        %618 = vmatpush1.msra.mxu0 0.0
        %619 = vmatprep.subr.mxu0 0.0
        %620 = vmatpush1.msra.mxu0 0.0
        %621 = vmatprep.subr.mxu0 0.0
        %622 = vmatpush1.msra.mxu0 0.0
        %623 = vmatprep.subr.mxu0 0.0
        %624 = vmatpush1.msra.mxu0 0.0
        %625 = vmatprep.subr.mxu0 0.0
        %626 = vmatpush1.msra.mxu0 0.0
        %627 = vmatprep.subr.mxu0 0.0
        %628 = vmatpush1.msra.mxu0 0.0
        %629 = vmatprep.subr.mxu0 0.0
        %630 = vmatpush1.msra.mxu0 0.0
        %631 = vmatprep.subr.mxu0 0.0
        %632 = vmatpush1.msra.mxu0 0.0
        %633 = vmatprep.subr.mxu0 0.0
        %634 = vmatpush1.msra.mxu0 0.0
        %635 = vmatprep.subr.mxu0 0.0
        %636 = vmatpush1.msra.mxu0 0.0
        %637 = vmatprep.subr.mxu0 0.0
        %638 = vmatpush1.msra.mxu0 0.0
        %639 = vmatprep.mubr.f32.mxu0 0.0
        %640 = vmatmul.mubr.f32.gmra.mrb[0].mxu0 %v574
        %v641 = vpop.f32.mrb[0].mxu0
        %v642 = vadd.f32 0.0, %v641
        %v643 = vpop.f32.mrb[0].mxu0
        %644 = vdwg.mxu0
        %v645 = vmul.f32 %v571, %v571
        %v646 = vsub.f32 %v642, %v645
        %v647 = vmax.f32 %v646, 0.0
        %v648 = vadd.f32 %v647, 1e-05
        %v649 = vrsqrt.pop %v648
        %vm650 = vcmask 31744
        %v652 = vsel %vm650, %v571, 0
        %vm654 = vcmask 1043456
        %v656 = vsel %vm654, %v389, 0
        %658 = vmatprep.subr.mxu0 0.0
        %659 = vmatpush1.msra.mxu0 %v656
        %660 = vmatprep.subr.mxu0 0.0
        %661 = vmatpush1.msra.mxu0 0.0
        %662 = vmatprep.subr.mxu0 0.0
        %663 = vmatpush1.msra.mxu0 0.0
        %664 = vmatprep.subr.mxu0 0.0
        %665 = vmatpush1.msra.mxu0 0.0
        %666 = vmatprep.subr.mxu0 0.0
        %667 = vmatpush1.msra.mxu0 0.0
        %668 = vmatprep.subr.mxu0 0.0
        %669 = vmatpush1.msra.mxu0 0.0
        %670 = vmatprep.subr.mxu0 0.0
        %671 = vmatpush1.msra.mxu0 0.0
        %672 = vmatprep.subr.mxu0 0.0
        %673 = vmatpush1.msra.mxu0 0.0
        %674 = vmatprep.subr.mxu0 0.0
        %675 = vmatpush1.msra.mxu0 0.0
        %676 = vmatprep.subr.mxu0 0.0
        %677 = vmatpush1.msra.mxu0 0.0
        %678 = vmatprep.subr.mxu0 0.0
        %679 = vmatpush1.msra.mxu0 0.0
        %680 = vmatprep.subr.mxu0 0.0
        %681 = vmatpush1.msra.mxu0 0.0
        %682 = vmatprep.subr.mxu0 0.0
        %683 = vmatpush1.msra.mxu0 0.0
        %684 = vmatprep.subr.mxu0 0.0
        %685 = vmatpush1.msra.mxu0 0.0
        %686 = vmatprep.subr.mxu0 0.0
        %687 = vmatpush1.msra.mxu0 0.0
        %688 = vmatprep.subr.mxu0 0.0
        %689 = vmatpush1.msra.mxu0 0.0
        %690 = vmatprep.subr.mxu0 0.0
        %691 = vmatpush1.msra.mxu0 0.0
        %692 = vmatprep.subr.mxu0 0.0
        %693 = vmatpush1.msra.mxu0 0.0
        %694 = vmatprep.subr.mxu0 0.0
        %695 = vmatpush1.msra.mxu0 0.0
        %696 = vmatprep.subr.mxu0 0.0
        %697 = vmatpush1.msra.mxu0 0.0
        %698 = vmatprep.subr.mxu0 0.0
        %699 = vmatpush1.msra.mxu0 0.0
        %700 = vmatprep.subr.mxu0 0.0
        %701 = vmatpush1.msra.mxu0 0.0
        %702 = vmatprep.subr.mxu0 0.0
        %703 = vmatpush1.msra.mxu0 0.0
        %704 = vmatprep.subr.mxu0 0.0
        %705 = vmatpush1.msra.mxu0 0.0
        %706 = vmatprep.subr.mxu0 0.0
        %707 = vmatpush1.msra.mxu0 0.0
        %708 = vmatprep.subr.mxu0 0.0
        %709 = vmatpush1.msra.mxu0 0.0
        %710 = vmatprep.subr.mxu0 0.0
        %711 = vmatpush1.msra.mxu0 0.0
        %712 = vmatprep.subr.mxu0 0.0
        %713 = vmatpush1.msra.mxu0 0.0
        %714 = vmatprep.subr.mxu0 0.0
        %715 = vmatpush1.msra.mxu0 0.0
        %716 = vmatprep.subr.mxu0 0.0
        %717 = vmatpush1.msra.mxu0 0.0
        %718 = vmatprep.subr.mxu0 0.0
        %719 = vmatpush1.msra.mxu0 0.0
        %720 = vmatprep.subr.mxu0 0.0
        %721 = vmatpush1.msra.mxu0 0.0
        %722 = vmatprep.mubr.f32.mxu0 0.0
        %723 = vmatmul.mubr.f32.gmra.mrb[0].mxu0 %v652
        %v724 = vpop.f32.mrb[0].mxu0
        %v725 = vadd.f32 0.0, %v724
        %v726 = vpop.f32.mrb[0].mxu0
        %727 = vdwg.mxu0
        %v729 = vsel %vm650, %v649, 0
        %v732 = vsel %vm654, %v390, 0
        %734 = vmatprep.subr.mxu0 0.0
        %735 = vmatpush1.msra.mxu0 %v732
        %736 = vmatprep.subr.mxu0 0.0
        %737 = vmatpush1.msra.mxu0 0.0
        %738 = vmatprep.subr.mxu0 0.0
        %739 = vmatpush1.msra.mxu0 0.0
        %740 = vmatprep.subr.mxu0 0.0
        %741 = vmatpush1.msra.mxu0 0.0
        %742 = vmatprep.subr.mxu0 0.0
        %743 = vmatpush1.msra.mxu0 0.0
        %744 = vmatprep.subr.mxu0 0.0
        %745 = vmatpush1.msra.mxu0 0.0
        %746 = vmatprep.subr.mxu0 0.0
        %747 = vmatpush1.msra.mxu0 0.0
        %748 = vmatprep.subr.mxu0 0.0
        %749 = vmatpush1.msra.mxu0 0.0
        %750 = vmatprep.subr.mxu0 0.0
        %751 = vmatpush1.msra.mxu0 0.0
        %752 = vmatprep.subr.mxu0 0.0
        %753 = vmatpush1.msra.mxu0 0.0
        %754 = vmatprep.subr.mxu0 0.0
        %755 = vmatpush1.msra.mxu0 0.0
        %756 = vmatprep.subr.mxu0 0.0
        %757 = vmatpush1.msra.mxu0 0.0
        %758 = vmatprep.subr.mxu0 0.0
        %759 = vmatpush1.msra.mxu0 0.0
        %760 = vmatprep.subr.mxu0 0.0
        %761 = vmatpush1.msra.mxu0 0.0
        %762 = vmatprep.subr.mxu0 0.0
        %763 = vmatpush1.msra.mxu0 0.0
        %764 = vmatprep.subr.mxu0 0.0
        %765 = vmatpush1.msra.mxu0 0.0
        %766 = vmatprep.subr.mxu0 0.0
        %767 = vmatpush1.msra.mxu0 0.0
        %768 = vmatprep.subr.mxu0 0.0
        %769 = vmatpush1.msra.mxu0 0.0
        %770 = vmatprep.subr.mxu0 0.0
        %771 = vmatpush1.msra.mxu0 0.0
        %772 = vmatprep.subr.mxu0 0.0
        %773 = vmatpush1.msra.mxu0 0.0
        %774 = vmatprep.subr.mxu0 0.0
        %775 = vmatpush1.msra.mxu0 0.0
        %776 = vmatprep.subr.mxu0 0.0
        %777 = vmatpush1.msra.mxu0 0.0
        %778 = vmatprep.subr.mxu0 0.0
        %779 = vmatpush1.msra.mxu0 0.0
        %780 = vmatprep.subr.mxu0 0.0
        %781 = vmatpush1.msra.mxu0 0.0
        %782 = vmatprep.subr.mxu0 0.0
        %783 = vmatpush1.msra.mxu0 0.0
        %784 = vmatprep.subr.mxu0 0.0
        %785 = vmatpush1.msra.mxu0 0.0
        %786 = vmatprep.subr.mxu0 0.0
        %787 = vmatpush1.msra.mxu0 0.0
        %788 = vmatprep.subr.mxu0 0.0
        %789 = vmatpush1.msra.mxu0 0.0
        %790 = vmatprep.subr.mxu0 0.0
        %791 = vmatpush1.msra.mxu0 0.0
        %792 = vmatprep.subr.mxu0 0.0
        %793 = vmatpush1.msra.mxu0 0.0
        %794 = vmatprep.subr.mxu0 0.0
        %795 = vmatpush1.msra.mxu0 0.0
        %796 = vmatprep.subr.mxu0 0.0
        %797 = vmatpush1.msra.mxu0 0.0
        %798 = vmatprep.mubr.f32.mxu0 0.0
        %799 = vmatmul.mubr.f32.gmra.mrb[0].mxu0 %v729
        %v800 = vpop.f32.mrb[0].mxu0
        %v801 = vadd.f32 0.0, %v800
        %v802 = vpop.f32.mrb[0].mxu0
        %803 = vdwg.mxu0
        %v804 = vsub.f32 %v499, %v725
        %v805 = vmul.f32 %v804, %v801
        %v806 = vlaneseq
        %v807 = vshrl.u32 %v806, 7
        %v808 = vsub.s32 2, %v807
        %v809 = vrot.slane %v372, %v808
        %v810 = vadd.f32 %v805, %v809
        %v811 = vmax.f32 %v810, 0.0
        %v812 = vpack.c.bf16 %v811, %v811
        %v813 = vld [vmem:[%s3] sm:$0xf]
        %v814 = vld [vmem:[%s3 + $0x4] sm:$0xf]
        %v815 = vld [vmem:[%s3 + $0x8] sm:$0xf]
        %v816 = vld [vmem:[%s3 + $0xc] sm:$0xf]
        %v817 = vld [vmem:[%s3 + $0x10] sm:$0xf]
        %v818 = vld [vmem:[%s3 + $0x14] sm:$0xf]
        %v819 = vld [vmem:[%s3 + $0x18] sm:$0xf]
        %v820 = vld [vmem:[%s3 + $0x1c] sm:$0xf]
        %v821 = vld [vmem:[%s3 + $0x20] sm:$0xf]
        %v822 = vld [vmem:[%s3 + $0x24] sm:$0xf]
        %v823 = vld [vmem:[%s3 + $0x28] sm:$0xf]
        %v824 = vld [vmem:[%s3 + $0x2c] sm:$0xf]
        %v825 = vld [vmem:[%s3 + $0x30] sm:$0xf]
        %v826 = vld [vmem:[%s3 + $0x34] sm:$0xf]
        %v827 = vld [vmem:[%s3 + $0x38] sm:$0xf]
        %v828 = vld [vmem:[%s3 + $0x3c] sm:$0xf]
        %v829 = vlaneseq
        %v830 = vshrl.u32 %v829, 7
        %v831 = vsub.s32 1, %v830
        %v832 = vrot.slane %v372, %v831
        %v849 = vunpack.c.l.b16 %v813
        %v850 = vunpack.c.l.b16 %v814
        %v851 = vunpack.c.l.b16 %v815
        %v852 = vunpack.c.l.b16 %v816
        %v853 = vunpack.c.l.b16 %v817
        %v854 = vunpack.c.l.b16 %v818
        %v855 = vunpack.c.l.b16 %v819
        %v856 = vunpack.c.l.b16 %v820
        %v857 = vunpack.c.l.b16 %v821
        %v858 = vunpack.c.l.b16 %v822
        %v859 = vunpack.c.l.b16 %v823
        %v860 = vunpack.c.l.b16 %v824
        %v861 = vunpack.c.l.b16 %v825
        %v862 = vunpack.c.l.b16 %v826
        %v863 = vunpack.c.l.b16 %v827
        %v864 = vunpack.c.l.b16 %v828
        %v865 = vpack.c.b16 %v850, %v849
        %v866 = vpack.c.b16 %v852, %v851
        %v867 = vpack.c.b16 %v854, %v853
        %v868 = vpack.c.b16 %v856, %v855
        %v869 = vpack.c.b16 %v858, %v857
        %v870 = vpack.c.b16 %v860, %v859
        %v871 = vpack.c.b16 %v862, %v861
        %v872 = vpack.c.b16 %v864, %v863
        %881 = vmatprep.subr.bf16.mxu0 0
        %882 = vmatpush1.bf16.msra.mxu0 %v865
        %883 = vmatprep.subr.bf16.mxu0 0
        %884 = vmatpush1.bf16.msra.mxu0 %v866
        %885 = vmatprep.subr.bf16.mxu0 0
        %886 = vmatpush1.bf16.msra.mxu0 %v867
        %887 = vmatprep.subr.bf16.mxu0 0
        %888 = vmatpush1.bf16.msra.mxu0 %v868
        %889 = vmatprep.subr.bf16.mxu0 0
        %890 = vmatpush1.bf16.msra.mxu0 %v869
        %891 = vmatprep.subr.bf16.mxu0 0
        %892 = vmatpush1.bf16.msra.mxu0 %v870
        %893 = vmatprep.subr.bf16.mxu0 0
        %894 = vmatpush1.bf16.msra.mxu0 %v871
        %895 = vmatprep.subr.bf16.mxu0 0
        %896 = vmatpush1.bf16.msra.mxu0 %v872
        %897 = vmatprep.subr.bf16.mxu0 0
        %898 = vmatpush1.bf16.msra.mxu0 0
        %899 = vmatprep.subr.bf16.mxu0 0
        %900 = vmatpush1.bf16.msra.mxu0 0
        %901 = vmatprep.subr.bf16.mxu0 0
        %902 = vmatpush1.bf16.msra.mxu0 0
        %903 = vmatprep.subr.bf16.mxu0 0
        %904 = vmatpush1.bf16.msra.mxu0 0
        %905 = vmatprep.subr.bf16.mxu0 0
        %906 = vmatpush1.bf16.msra.mxu0 0
        %907 = vmatprep.subr.bf16.mxu0 0
        %908 = vmatpush1.bf16.msra.mxu0 0
        %909 = vmatprep.subr.bf16.mxu0 0
        %910 = vmatpush1.bf16.msra.mxu0 0
        %911 = vmatprep.subr.bf16.mxu0 0
        %912 = vmatpush1.bf16.msra.mxu0 0
        %913 = vmatprep.mubr.bf16.mxu0 0
        %914 = vmatmul.mubr.bf16.gmra.mrb[0].mxu0 %v812
        %v915 = vpop.f32.mrb[0].mxu0
        %v916 = vadd.f32 %v832, %v915
        %v917 = vpop.f32.mrb[0].mxu0
        %v918 = vpop.f32.mrb[0].mxu0
        %v919 = vpop.f32.mrb[0].mxu0
        %920 = vdwg.mxu0
        %v921 = vld [vmem:[%s328] sm:$0xff]
        %v922 = vadd.f32 %v916, %v921
        %923 = vmatprep.subr.mxu0 0.0
        %924 = vmatpush1.msra.mxu0 %v373
        %925 = vmatprep.subr.mxu0 0.0
        %926 = vmatpush1.msra.mxu0 %v374
        %927 = vmatprep.subr.mxu0 0.0
        %928 = vmatpush1.msra.mxu0 %v375
        %929 = vmatprep.subr.mxu0 0.0
        %930 = vmatpush1.msra.mxu0 %v376
        %931 = vmatprep.subr.mxu0 0.0
        %932 = vmatpush1.msra.mxu0 %v377
        %933 = vmatprep.subr.mxu0 0.0
        %934 = vmatpush1.msra.mxu0 %v378
        %935 = vmatprep.subr.mxu0 0.0
        %936 = vmatpush1.msra.mxu0 %v379
        %937 = vmatprep.subr.mxu0 0.0
        %938 = vmatpush1.msra.mxu0 %v380
        %939 = vmatprep.subr.mxu0 0.0
        %940 = vmatpush1.msra.mxu0 %v381
        %941 = vmatprep.subr.mxu0 0.0
        %942 = vmatpush1.msra.mxu0 %v382
        %943 = vmatprep.subr.mxu0 0.0
        %944 = vmatpush1.msra.mxu0 %v383
        %945 = vmatprep.subr.mxu0 0.0
        %946 = vmatpush1.msra.mxu0 %v384
        %947 = vmatprep.subr.mxu0 0.0
        %948 = vmatpush1.msra.mxu0 %v385
        %949 = vmatprep.subr.mxu0 0.0
        %950 = vmatpush1.msra.mxu0 %v386
        %951 = vmatprep.subr.mxu0 0.0
        %952 = vmatpush1.msra.mxu0 %v387
        %953 = vmatprep.subr.mxu0 0.0
        %954 = vmatpush1.msra.mxu0 %v388
        %955 = vmatprep.subr.mxu0 0.0
        %956 = vmatpush1.msra.mxu0 0.0
        %957 = vmatprep.subr.mxu0 0.0
        %958 = vmatpush1.msra.mxu0 0.0
        %959 = vmatprep.subr.mxu0 0.0
        %960 = vmatpush1.msra.mxu0 0.0
        %961 = vmatprep.subr.mxu0 0.0
        %962 = vmatpush1.msra.mxu0 0.0
        %963 = vmatprep.subr.mxu0 0.0
        %964 = vmatpush1.msra.mxu0 0.0
        %965 = vmatprep.subr.mxu0 0.0
        %966 = vmatpush1.msra.mxu0 0.0
        %967 = vmatprep.subr.mxu0 0.0
        %968 = vmatpush1.msra.mxu0 0.0
        %969 = vmatprep.subr.mxu0 0.0
        %970 = vmatpush1.msra.mxu0 0.0
        %971 = vmatprep.subr.mxu0 0.0
        %972 = vmatpush1.msra.mxu0 0.0
        %973 = vmatprep.subr.mxu0 0.0
        %974 = vmatpush1.msra.mxu0 0.0
        %975 = vmatprep.subr.mxu0 0.0
        %976 = vmatpush1.msra.mxu0 0.0
        %977 = vmatprep.subr.mxu0 0.0
        %978 = vmatpush1.msra.mxu0 0.0
        %979 = vmatprep.subr.mxu0 0.0
        %980 = vmatpush1.msra.mxu0 0.0
        %981 = vmatprep.subr.mxu0 0.0
        %982 = vmatpush1.msra.mxu0 0.0
        %983 = vmatprep.subr.mxu0 0.0
        %984 = vmatpush1.msra.mxu0 0.0
        %985 = vmatprep.subr.mxu0 0.0
        %986 = vmatpush1.msra.mxu0 0.0
        %987 = vmatprep.mubr.f32.mxu0 0.0
        %988 = vmatmul.mubr.f32.gmra.mrb[0].mxu0 %v922
        %v989 = vpop.f32.mrb[0].mxu0
        %v990 = vadd.f32 0.0, %v989
        %v991 = vpop.f32.mrb[0].mxu0
        %992 = vdwg.mxu0
        %v993 = vmul.f32 %v922, %v922
        %994 = vmatprep.subr.mxu0 0.0
        %995 = vmatpush1.msra.mxu0 %v373
        %996 = vmatprep.subr.mxu0 0.0
        %997 = vmatpush1.msra.mxu0 %v374
        %998 = vmatprep.subr.mxu0 0.0
        %999 = vmatpush1.msra.mxu0 %v375
        %1000 = vmatprep.subr.mxu0 0.0
        %1001 = vmatpush1.msra.mxu0 %v376
        %1002 = vmatprep.subr.mxu0 0.0
        %1003 = vmatpush1.msra.mxu0 %v377
        %1004 = vmatprep.subr.mxu0 0.0
        %1005 = vmatpush1.msra.mxu0 %v378
        %1006 = vmatprep.subr.mxu0 0.0
        %1007 = vmatpush1.msra.mxu0 %v379
        %1008 = vmatprep.subr.mxu0 0.0
        %1009 = vmatpush1.msra.mxu0 %v380
        %1010 = vmatprep.subr.mxu0 0.0
        %1011 = vmatpush1.msra.mxu0 %v381
        %1012 = vmatprep.subr.mxu0 0.0
        %1013 = vmatpush1.msra.mxu0 %v382
        %1014 = vmatprep.subr.mxu0 0.0
        %1015 = vmatpush1.msra.mxu0 %v383
        %1016 = vmatprep.subr.mxu0 0.0
        %1017 = vmatpush1.msra.mxu0 %v384
        %1018 = vmatprep.subr.mxu0 0.0
        %1019 = vmatpush1.msra.mxu0 %v385
        %1020 = vmatprep.subr.mxu0 0.0
        %1021 = vmatpush1.msra.mxu0 %v386
        %1022 = vmatprep.subr.mxu0 0.0
        %1023 = vmatpush1.msra.mxu0 %v387
        %1024 = vmatprep.subr.mxu0 0.0
        %1025 = vmatpush1.msra.mxu0 %v388
        %1026 = vmatprep.subr.mxu0 0.0
        %1027 = vmatpush1.msra.mxu0 0.0
        %1028 = vmatprep.subr.mxu0 0.0
        %1029 = vmatpush1.msra.mxu0 0.0
        %1030 = vmatprep.subr.mxu0 0.0
        %1031 = vmatpush1.msra.mxu0 0.0
        %1032 = vmatprep.subr.mxu0 0.0
        %1033 = vmatpush1.msra.mxu0 0.0
        %1034 = vmatprep.subr.mxu0 0.0
        %1035 = vmatpush1.msra.mxu0 0.0
        %1036 = vmatprep.subr.mxu0 0.0
        %1037 = vmatpush1.msra.mxu0 0.0
        %1038 = vmatprep.subr.mxu0 0.0
        %1039 = vmatpush1.msra.mxu0 0.0
        %1040 = vmatprep.subr.mxu0 0.0
        %1041 = vmatpush1.msra.mxu0 0.0
        %1042 = vmatprep.subr.mxu0 0.0
        %1043 = vmatpush1.msra.mxu0 0.0
        %1044 = vmatprep.subr.mxu0 0.0
        %1045 = vmatpush1.msra.mxu0 0.0
        %1046 = vmatprep.subr.mxu0 0.0
        %1047 = vmatpush1.msra.mxu0 0.0
        %1048 = vmatprep.subr.mxu0 0.0
        %1049 = vmatpush1.msra.mxu0 0.0
        %1050 = vmatprep.subr.mxu0 0.0
        %1051 = vmatpush1.msra.mxu0 0.0
        %1052 = vmatprep.subr.mxu0 0.0
        %1053 = vmatpush1.msra.mxu0 0.0
        %1054 = vmatprep.subr.mxu0 0.0
        %1055 = vmatpush1.msra.mxu0 0.0
        %1056 = vmatprep.subr.mxu0 0.0
        %1057 = vmatpush1.msra.mxu0 0.0
        %1058 = vmatprep.mubr.f32.mxu0 0.0
        %1059 = vmatmul.mubr.f32.gmra.mrb[0].mxu0 %v993
        %v1060 = vpop.f32.mrb[0].mxu0
        %v1061 = vadd.f32 0.0, %v1060
        %v1062 = vpop.f32.mrb[0].mxu0
        %1063 = vdwg.mxu0
        %v1064 = vmul.f32 %v990, %v990
        %v1065 = vsub.f32 %v1061, %v1064
        %v1066 = vmax.f32 %v1065, 0.0
        %v1067 = vadd.f32 %v1066, 1e-05
        %v1068 = vrsqrt.pop %v1067
        %v1070 = vsel %vm650, %v990, 0
        %1072 = vmatprep.subr.mxu0 0.0
        %1073 = vmatpush1.msra.mxu0 %v656
        %1074 = vmatprep.subr.mxu0 0.0
        %1075 = vmatpush1.msra.mxu0 0.0
        %1076 = vmatprep.subr.mxu0 0.0
        %1077 = vmatpush1.msra.mxu0 0.0
        %1078 = vmatprep.subr.mxu0 0.0
        %1079 = vmatpush1.msra.mxu0 0.0
        %1080 = vmatprep.subr.mxu0 0.0
        %1081 = vmatpush1.msra.mxu0 0.0
        %1082 = vmatprep.subr.mxu0 0.0
        %1083 = vmatpush1.msra.mxu0 0.0
        %1084 = vmatprep.subr.mxu0 0.0
        %1085 = vmatpush1.msra.mxu0 0.0
        %1086 = vmatprep.subr.mxu0 0.0
        %1087 = vmatpush1.msra.mxu0 0.0
        %1088 = vmatprep.subr.mxu0 0.0
        %1089 = vmatpush1.msra.mxu0 0.0
        %1090 = vmatprep.subr.mxu0 0.0
        %1091 = vmatpush1.msra.mxu0 0.0
        %1092 = vmatprep.subr.mxu0 0.0
        %1093 = vmatpush1.msra.mxu0 0.0
        %1094 = vmatprep.subr.mxu0 0.0
        %1095 = vmatpush1.msra.mxu0 0.0
        %1096 = vmatprep.subr.mxu0 0.0
        %1097 = vmatpush1.msra.mxu0 0.0
        %1098 = vmatprep.subr.mxu0 0.0
        %1099 = vmatpush1.msra.mxu0 0.0
        %1100 = vmatprep.subr.mxu0 0.0
        %1101 = vmatpush1.msra.mxu0 0.0
        %1102 = vmatprep.subr.mxu0 0.0
        %1103 = vmatpush1.msra.mxu0 0.0
        %1104 = vmatprep.subr.mxu0 0.0
        %1105 = vmatpush1.msra.mxu0 0.0
        %1106 = vmatprep.subr.mxu0 0.0
        %1107 = vmatpush1.msra.mxu0 0.0
        %1108 = vmatprep.subr.mxu0 0.0
        %1109 = vmatpush1.msra.mxu0 0.0
        %1110 = vmatprep.subr.mxu0 0.0
        %1111 = vmatpush1.msra.mxu0 0.0
        %1112 = vmatprep.subr.mxu0 0.0
        %1113 = vmatpush1.msra.mxu0 0.0
        %1114 = vmatprep.subr.mxu0 0.0
        %1115 = vmatpush1.msra.mxu0 0.0
        %1116 = vmatprep.subr.mxu0 0.0
        %1117 = vmatpush1.msra.mxu0 0.0
        %1118 = vmatprep.subr.mxu0 0.0
        %1119 = vmatpush1.msra.mxu0 0.0
        %1120 = vmatprep.subr.mxu0 0.0
        %1121 = vmatpush1.msra.mxu0 0.0
        %1122 = vmatprep.subr.mxu0 0.0
        %1123 = vmatpush1.msra.mxu0 0.0
        %1124 = vmatprep.subr.mxu0 0.0
        %1125 = vmatpush1.msra.mxu0 0.0
        %1126 = vmatprep.subr.mxu0 0.0
        %1127 = vmatpush1.msra.mxu0 0.0
        %1128 = vmatprep.subr.mxu0 0.0
        %1129 = vmatpush1.msra.mxu0 0.0
        %1130 = vmatprep.subr.mxu0 0.0
        %1131 = vmatpush1.msra.mxu0 0.0
        %1132 = vmatprep.subr.mxu0 0.0
        %1133 = vmatpush1.msra.mxu0 0.0
        %1134 = vmatprep.subr.mxu0 0.0
        %1135 = vmatpush1.msra.mxu0 0.0
        %1136 = vmatprep.mubr.f32.mxu0 0.0
        %1137 = vmatmul.mubr.f32.gmra.mrb[0].mxu0 %v1070
        %v1138 = vpop.f32.mrb[0].mxu0
        %v1139 = vadd.f32 0.0, %v1138
        %v1140 = vpop.f32.mrb[0].mxu0
        %1141 = vdwg.mxu0
        %v1143 = vsel %vm650, %v1068, 0
        %v1146 = vsel %vm654, %v392, 0
        %1148 = vmatprep.subr.mxu0 0.0
        %1149 = vmatpush1.msra.mxu0 %v1146
        %1150 = vmatprep.subr.mxu0 0.0
        %1151 = vmatpush1.msra.mxu0 0.0
        %1152 = vmatprep.subr.mxu0 0.0
        %1153 = vmatpush1.msra.mxu0 0.0
        %1154 = vmatprep.subr.mxu0 0.0
        %1155 = vmatpush1.msra.mxu0 0.0
        %1156 = vmatprep.subr.mxu0 0.0
        %1157 = vmatpush1.msra.mxu0 0.0
        %1158 = vmatprep.subr.mxu0 0.0
        %1159 = vmatpush1.msra.mxu0 0.0
        %1160 = vmatprep.subr.mxu0 0.0
        %1161 = vmatpush1.msra.mxu0 0.0
        %1162 = vmatprep.subr.mxu0 0.0
        %1163 = vmatpush1.msra.mxu0 0.0
        %1164 = vmatprep.subr.mxu0 0.0
        %1165 = vmatpush1.msra.mxu0 0.0
        %1166 = vmatprep.subr.mxu0 0.0
        %1167 = vmatpush1.msra.mxu0 0.0
        %1168 = vmatprep.subr.mxu0 0.0
        %1169 = vmatpush1.msra.mxu0 0.0
        %1170 = vmatprep.subr.mxu0 0.0
        %1171 = vmatpush1.msra.mxu0 0.0
        %1172 = vmatprep.subr.mxu0 0.0
        %1173 = vmatpush1.msra.mxu0 0.0
        %1174 = vmatprep.subr.mxu0 0.0
        %1175 = vmatpush1.msra.mxu0 0.0
        %1176 = vmatprep.subr.mxu0 0.0
        %1177 = vmatpush1.msra.mxu0 0.0
        %1178 = vmatprep.subr.mxu0 0.0
        %1179 = vmatpush1.msra.mxu0 0.0
        %1180 = vmatprep.subr.mxu0 0.0
        %1181 = vmatpush1.msra.mxu0 0.0
        %1182 = vmatprep.subr.mxu0 0.0
        %1183 = vmatpush1.msra.mxu0 0.0
        %1184 = vmatprep.subr.mxu0 0.0
        %1185 = vmatpush1.msra.mxu0 0.0
        %1186 = vmatprep.subr.mxu0 0.0
        %1187 = vmatpush1.msra.mxu0 0.0
        %1188 = vmatprep.subr.mxu0 0.0
        %1189 = vmatpush1.msra.mxu0 0.0
        %1190 = vmatprep.subr.mxu0 0.0
        %1191 = vmatpush1.msra.mxu0 0.0
        %1192 = vmatprep.subr.mxu0 0.0
        %1193 = vmatpush1.msra.mxu0 0.0
        %1194 = vmatprep.subr.mxu0 0.0
        %1195 = vmatpush1.msra.mxu0 0.0
        %1196 = vmatprep.subr.mxu0 0.0
        %1197 = vmatpush1.msra.mxu0 0.0
        %1198 = vmatprep.subr.mxu0 0.0
        %1199 = vmatpush1.msra.mxu0 0.0
        %1200 = vmatprep.subr.mxu0 0.0
        %1201 = vmatpush1.msra.mxu0 0.0
        %1202 = vmatprep.subr.mxu0 0.0
        %1203 = vmatpush1.msra.mxu0 0.0
        %1204 = vmatprep.subr.mxu0 0.0
        %1205 = vmatpush1.msra.mxu0 0.0
        %1206 = vmatprep.subr.mxu0 0.0
        %1207 = vmatpush1.msra.mxu0 0.0
        %1208 = vmatprep.subr.mxu0 0.0
        %1209 = vmatpush1.msra.mxu0 0.0
        %1210 = vmatprep.subr.mxu0 0.0
        %1211 = vmatpush1.msra.mxu0 0.0
        %1212 = vmatprep.mubr.f32.mxu0 0.0
        %1213 = vmatmul.mubr.f32.gmra.mrb[0].mxu0 %v1143
        %v1214 = vpop.f32.mrb[0].mxu0
        %v1215 = vadd.f32 0.0, %v1214
        %v1216 = vpop.f32.mrb[0].mxu0
        %1217 = vdwg.mxu0
        %v1218 = vsub.f32 %v922, %v1139
        %v1219 = vmul.f32 %v1218, %v1215
        %v1220 = vlaneseq
        %v1221 = vshrl.u32 %v1220, 7
        %v1222 = vsub.s32 3, %v1221
        %v1223 = vrot.slane %v372, %v1222
        %v1224 = vadd.f32 %v1219, %v1223
        %v1225 = vadd.f32 %v1224, %v371
        %v1226 = vmax.f32 %v1225, 0.0
        %1227 = vmatprep.subr.mxu0 0.0
        %1228 = vmatpush1.msra.mxu0 %v373
        %1229 = vmatprep.subr.mxu0 0.0
        %1230 = vmatpush1.msra.mxu0 %v374
        %1231 = vmatprep.subr.mxu0 0.0
        %1232 = vmatpush1.msra.mxu0 %v375
        %1233 = vmatprep.subr.mxu0 0.0
        %1234 = vmatpush1.msra.mxu0 %v376
        %1235 = vmatprep.subr.mxu0 0.0
        %1236 = vmatpush1.msra.mxu0 %v377
        %1237 = vmatprep.subr.mxu0 0.0
        %1238 = vmatpush1.msra.mxu0 %v378
        %1239 = vmatprep.subr.mxu0 0.0
        %1240 = vmatpush1.msra.mxu0 %v379
        %1241 = vmatprep.subr.mxu0 0.0
        %1242 = vmatpush1.msra.mxu0 %v380
        %1243 = vmatprep.subr.mxu0 0.0
        %1244 = vmatpush1.msra.mxu0 %v381
        %1245 = vmatprep.subr.mxu0 0.0
        %1246 = vmatpush1.msra.mxu0 %v382
        %1247 = vmatprep.subr.mxu0 0.0
        %1248 = vmatpush1.msra.mxu0 %v383
        %1249 = vmatprep.subr.mxu0 0.0
        %1250 = vmatpush1.msra.mxu0 %v384
        %1251 = vmatprep.subr.mxu0 0.0
        %1252 = vmatpush1.msra.mxu0 %v385
        %1253 = vmatprep.subr.mxu0 0.0
        %1254 = vmatpush1.msra.mxu0 %v386
        %1255 = vmatprep.subr.mxu0 0.0
        %1256 = vmatpush1.msra.mxu0 %v387
        %1257 = vmatprep.subr.mxu0 0.0
        %1258 = vmatpush1.msra.mxu0 %v388
        %1259 = vmatprep.subr.mxu0 0.0
        %1260 = vmatpush1.msra.mxu0 0.0
        %1261 = vmatprep.subr.mxu0 0.0
        %1262 = vmatpush1.msra.mxu0 0.0
        %1263 = vmatprep.subr.mxu0 0.0
        %1264 = vmatpush1.msra.mxu0 0.0
        %1265 = vmatprep.subr.mxu0 0.0
        %1266 = vmatpush1.msra.mxu0 0.0
        %1267 = vmatprep.subr.mxu0 0.0
        %1268 = vmatpush1.msra.mxu0 0.0
        %1269 = vmatprep.subr.mxu0 0.0
        %1270 = vmatpush1.msra.mxu0 0.0
        %1271 = vmatprep.subr.mxu0 0.0
        %1272 = vmatpush1.msra.mxu0 0.0
        %1273 = vmatprep.subr.mxu0 0.0
        %1274 = vmatpush1.msra.mxu0 0.0
        %1275 = vmatprep.subr.mxu0 0.0
        %1276 = vmatpush1.msra.mxu0 0.0
        %1277 = vmatprep.subr.mxu0 0.0
        %1278 = vmatpush1.msra.mxu0 0.0
        %1279 = vmatprep.subr.mxu0 0.0
        %1280 = vmatpush1.msra.mxu0 0.0
        %1281 = vmatprep.subr.mxu0 0.0
        %1282 = vmatpush1.msra.mxu0 0.0
        %1283 = vmatprep.subr.mxu0 0.0
        %1284 = vmatpush1.msra.mxu0 0.0
        %1285 = vmatprep.subr.mxu0 0.0
        %1286 = vmatpush1.msra.mxu0 0.0
        %1287 = vmatprep.subr.mxu0 0.0
        %1288 = vmatpush1.msra.mxu0 0.0
        %1289 = vmatprep.subr.mxu0 0.0
        %1290 = vmatpush1.msra.mxu0 0.0
        %1291 = vmatprep.mubr.f32.mxu0 0.0
        %1292 = vmatmul.mubr.f32.gmra.mrb[0].mxu0 %v1226
        %v1293 = vpop.f32.mrb[0].mxu0
        %v1294 = vadd.f32 0.0, %v1293
        %v1295 = vpop.f32.mrb[0].mxu0
        %1296 = vdwg.mxu0
        %v1297 = vmul.f32 %v1226, %v1226
        %1298 = vmatprep.subr.mxu0 0.0
        %1299 = vmatpush1.msra.mxu0 %v373
        %1300 = vmatprep.subr.mxu0 0.0
        %1301 = vmatpush1.msra.mxu0 %v374
        %1302 = vmatprep.subr.mxu0 0.0
        %1303 = vmatpush1.msra.mxu0 %v375
        %1304 = vmatprep.subr.mxu0 0.0
        %1305 = vmatpush1.msra.mxu0 %v376
        %1306 = vmatprep.subr.mxu0 0.0
        %1307 = vmatpush1.msra.mxu0 %v377
        %1308 = vmatprep.subr.mxu0 0.0
        %1309 = vmatpush1.msra.mxu0 %v378
        %1310 = vmatprep.subr.mxu0 0.0
        %1311 = vmatpush1.msra.mxu0 %v379
        %1312 = vmatprep.subr.mxu0 0.0
        %1313 = vmatpush1.msra.mxu0 %v380
        %1314 = vmatprep.subr.mxu0 0.0
        %1315 = vmatpush1.msra.mxu0 %v381
        %1316 = vmatprep.subr.mxu0 0.0
        %1317 = vmatpush1.msra.mxu0 %v382
        %1318 = vmatprep.subr.mxu0 0.0
        %1319 = vmatpush1.msra.mxu0 %v383
        %1320 = vmatprep.subr.mxu0 0.0
        %1321 = vmatpush1.msra.mxu0 %v384
        %1322 = vmatprep.subr.mxu0 0.0
        %1323 = vmatpush1.msra.mxu0 %v385
        %1324 = vmatprep.subr.mxu0 0.0
        %1325 = vmatpush1.msra.mxu0 %v386
        %1326 = vmatprep.subr.mxu0 0.0
        %1327 = vmatpush1.msra.mxu0 %v387
        %1328 = vmatprep.subr.mxu0 0.0
        %1329 = vmatpush1.msra.mxu0 %v388
        %1330 = vmatprep.subr.mxu0 0.0
        %1331 = vmatpush1.msra.mxu0 0.0
        %1332 = vmatprep.subr.mxu0 0.0
        %1333 = vmatpush1.msra.mxu0 0.0
        %1334 = vmatprep.subr.mxu0 0.0
        %1335 = vmatpush1.msra.mxu0 0.0
        %1336 = vmatprep.subr.mxu0 0.0
        %1337 = vmatpush1.msra.mxu0 0.0
        %1338 = vmatprep.subr.mxu0 0.0
        %1339 = vmatpush1.msra.mxu0 0.0
        %1340 = vmatprep.subr.mxu0 0.0
        %1341 = vmatpush1.msra.mxu0 0.0
        %1342 = vmatprep.subr.mxu0 0.0
        %1343 = vmatpush1.msra.mxu0 0.0
        %1344 = vmatprep.subr.mxu0 0.0
        %1345 = vmatpush1.msra.mxu0 0.0
        %1346 = vmatprep.subr.mxu0 0.0
        %1347 = vmatpush1.msra.mxu0 0.0
        %1348 = vmatprep.subr.mxu0 0.0
        %1349 = vmatpush1.msra.mxu0 0.0
        %1350 = vmatprep.subr.mxu0 0.0
        %1351 = vmatpush1.msra.mxu0 0.0
        %1352 = vmatprep.subr.mxu0 0.0
        %1353 = vmatpush1.msra.mxu0 0.0
        %1354 = vmatprep.subr.mxu0 0.0
        %1355 = vmatpush1.msra.mxu0 0.0
        %1356 = vmatprep.subr.mxu0 0.0
        %1357 = vmatpush1.msra.mxu0 0.0
        %1358 = vmatprep.subr.mxu0 0.0
        %1359 = vmatpush1.msra.mxu0 0.0
        %1360 = vmatprep.subr.mxu0 0.0
        %1361 = vmatpush1.msra.mxu0 0.0
        %1362 = vmatprep.mubr.f32.mxu0 0.0
        %1363 = vmatmul.mubr.f32.gmra.mrb[0].mxu0 %v1297
        %v1364 = vpop.f32.mrb[0].mxu0
        %v1365 = vadd.f32 0.0, %v1364
        %v1366 = vpop.f32.mrb[0].mxu0
        %1367 = vdwg.mxu0
        %v1368 = vmul.f32 %v1294, %v1294
        %v1369 = vsub.f32 %v1365, %v1368
        %v1370 = vmax.f32 %v1369, 0.0
        %v1371 = vadd.f32 %v1370, 1e-05
        %v1372 = vrsqrt.pop %v1371
        %v1374 = vsel %vm650, %v1294, 0
        %1376 = vmatprep.subr.mxu0 0.0
        %1377 = vmatpush1.msra.mxu0 %v656
        %1378 = vmatprep.subr.mxu0 0.0
        %1379 = vmatpush1.msra.mxu0 0.0
        %1380 = vmatprep.subr.mxu0 0.0
        %1381 = vmatpush1.msra.mxu0 0.0
        %1382 = vmatprep.subr.mxu0 0.0
        %1383 = vmatpush1.msra.mxu0 0.0
        %1384 = vmatprep.subr.mxu0 0.0
        %1385 = vmatpush1.msra.mxu0 0.0
        %1386 = vmatprep.subr.mxu0 0.0
        %1387 = vmatpush1.msra.mxu0 0.0
        %1388 = vmatprep.subr.mxu0 0.0
        %1389 = vmatpush1.msra.mxu0 0.0
        %1390 = vmatprep.subr.mxu0 0.0
        %1391 = vmatpush1.msra.mxu0 0.0
        %1392 = vmatprep.subr.mxu0 0.0
        %1393 = vmatpush1.msra.mxu0 0.0
        %1394 = vmatprep.subr.mxu0 0.0
        %1395 = vmatpush1.msra.mxu0 0.0
        %1396 = vmatprep.subr.mxu0 0.0
        %1397 = vmatpush1.msra.mxu0 0.0
        %1398 = vmatprep.subr.mxu0 0.0
        %1399 = vmatpush1.msra.mxu0 0.0
        %1400 = vmatprep.subr.mxu0 0.0
        %1401 = vmatpush1.msra.mxu0 0.0
        %1402 = vmatprep.subr.mxu0 0.0
        %1403 = vmatpush1.msra.mxu0 0.0
        %1404 = vmatprep.subr.mxu0 0.0
        %1405 = vmatpush1.msra.mxu0 0.0
        %1406 = vmatprep.subr.mxu0 0.0
        %1407 = vmatpush1.msra.mxu0 0.0
        %1408 = vmatprep.subr.mxu0 0.0
        %1409 = vmatpush1.msra.mxu0 0.0
        %1410 = vmatprep.subr.mxu0 0.0
        %1411 = vmatpush1.msra.mxu0 0.0
        %1412 = vmatprep.subr.mxu0 0.0
        %1413 = vmatpush1.msra.mxu0 0.0
        %1414 = vmatprep.subr.mxu0 0.0
        %1415 = vmatpush1.msra.mxu0 0.0
        %1416 = vmatprep.subr.mxu0 0.0
        %1417 = vmatpush1.msra.mxu0 0.0
        %1418 = vmatprep.subr.mxu0 0.0
        %1419 = vmatpush1.msra.mxu0 0.0
        %1420 = vmatprep.subr.mxu0 0.0
        %1421 = vmatpush1.msra.mxu0 0.0
        %1422 = vmatprep.subr.mxu0 0.0
        %1423 = vmatpush1.msra.mxu0 0.0
        %1424 = vmatprep.subr.mxu0 0.0
        %1425 = vmatpush1.msra.mxu0 0.0
        %1426 = vmatprep.subr.mxu0 0.0
        %1427 = vmatpush1.msra.mxu0 0.0
        %1428 = vmatprep.subr.mxu0 0.0
        %1429 = vmatpush1.msra.mxu0 0.0
        %1430 = vmatprep.subr.mxu0 0.0
        %1431 = vmatpush1.msra.mxu0 0.0
        %1432 = vmatprep.subr.mxu0 0.0
        %1433 = vmatpush1.msra.mxu0 0.0
        %1434 = vmatprep.subr.mxu0 0.0
        %1435 = vmatpush1.msra.mxu0 0.0
        %1436 = vmatprep.subr.mxu0 0.0
        %1437 = vmatpush1.msra.mxu0 0.0
        %1438 = vmatprep.subr.mxu0 0.0
        %1439 = vmatpush1.msra.mxu0 0.0
        %1440 = vmatprep.mubr.f32.mxu0 0.0
        %1441 = vmatmul.mubr.f32.gmra.mrb[0].mxu0 %v1374
        %v1442 = vpop.f32.mrb[0].mxu0
        %v1443 = vadd.f32 0.0, %v1442
        %v1444 = vpop.f32.mrb[0].mxu0
        %1445 = vdwg.mxu0
        %v1447 = vsel %vm650, %v1372, 0
        %v1450 = vsel %vm654, %v394, 0
        %1452 = vmatprep.subr.mxu0 0.0
        %1453 = vmatpush1.msra.mxu0 %v1450
        %1454 = vmatprep.subr.mxu0 0.0
        %1455 = vmatpush1.msra.mxu0 0.0
        %1456 = vmatprep.subr.mxu0 0.0
        %1457 = vmatpush1.msra.mxu0 0.0
        %1458 = vmatprep.subr.mxu0 0.0
        %1459 = vmatpush1.msra.mxu0 0.0
        %1460 = vmatprep.subr.mxu0 0.0
        %1461 = vmatpush1.msra.mxu0 0.0
        %1462 = vmatprep.subr.mxu0 0.0
        %1463 = vmatpush1.msra.mxu0 0.0
        %1464 = vmatprep.subr.mxu0 0.0
        %1465 = vmatpush1.msra.mxu0 0.0
        %1466 = vmatprep.subr.mxu0 0.0
        %1467 = vmatpush1.msra.mxu0 0.0
        %1468 = vmatprep.subr.mxu0 0.0
        %1469 = vmatpush1.msra.mxu0 0.0
        %1470 = vmatprep.subr.mxu0 0.0
        %1471 = vmatpush1.msra.mxu0 0.0
        %1472 = vmatprep.subr.mxu0 0.0
        %1473 = vmatpush1.msra.mxu0 0.0
        %1474 = vmatprep.subr.mxu0 0.0
        %1475 = vmatpush1.msra.mxu0 0.0
        %1476 = vmatprep.subr.mxu0 0.0
        %1477 = vmatpush1.msra.mxu0 0.0
        %1478 = vmatprep.subr.mxu0 0.0
        %1479 = vmatpush1.msra.mxu0 0.0
        %1480 = vmatprep.subr.mxu0 0.0
        %1481 = vmatpush1.msra.mxu0 0.0
        %1482 = vmatprep.subr.mxu0 0.0
        %1483 = vmatpush1.msra.mxu0 0.0
        %1484 = vmatprep.subr.mxu0 0.0
        %1485 = vmatpush1.msra.mxu0 0.0
        %1486 = vmatprep.subr.mxu0 0.0
        %1487 = vmatpush1.msra.mxu0 0.0
        %1488 = vmatprep.subr.mxu0 0.0
        %1489 = vmatpush1.msra.mxu0 0.0
        %1490 = vmatprep.subr.mxu0 0.0
        %1491 = vmatpush1.msra.mxu0 0.0
        %1492 = vmatprep.subr.mxu0 0.0
        %1493 = vmatpush1.msra.mxu0 0.0
        %1494 = vmatprep.subr.mxu0 0.0
        %1495 = vmatpush1.msra.mxu0 0.0
        %1496 = vmatprep.subr.mxu0 0.0
        %1497 = vmatpush1.msra.mxu0 0.0
        %1498 = vmatprep.subr.mxu0 0.0
        %1499 = vmatpush1.msra.mxu0 0.0
        %1500 = vmatprep.subr.mxu0 0.0
        %1501 = vmatpush1.msra.mxu0 0.0
        %1502 = vmatprep.subr.mxu0 0.0
        %1503 = vmatpush1.msra.mxu0 0.0
        %1504 = vmatprep.subr.mxu0 0.0
        %1505 = vmatpush1.msra.mxu0 0.0
        %1506 = vmatprep.subr.mxu0 0.0
        %1507 = vmatpush1.msra.mxu0 0.0
        %1508 = vmatprep.subr.mxu0 0.0
        %1509 = vmatpush1.msra.mxu0 0.0
        %1510 = vmatprep.subr.mxu0 0.0
        %1511 = vmatpush1.msra.mxu0 0.0
        %1512 = vmatprep.subr.mxu0 0.0
        %1513 = vmatpush1.msra.mxu0 0.0
        %1514 = vmatprep.subr.mxu0 0.0
        %1515 = vmatpush1.msra.mxu0 0.0
        %1516 = vmatprep.mubr.f32.mxu0 0.0
        %1517 = vmatmul.mubr.f32.gmra.mrb[0].mxu0 %v1447
        %v1518 = vpop.f32.mrb[0].mxu0
        %v1519 = vadd.f32 0.0, %v1518
        %v1520 = vpop.f32.mrb[0].mxu0
        %1521 = vdwg.mxu0
        %v1522 = vsub.f32 %v1226, %v1443
        %v1523 = vmul.f32 %v1522, %v1519
        %v1524 = vlaneseq
        %v1525 = vshrl.u32 %v1524, 7
        %v1526 = vsub.s32 4, %v1525
        %v1527 = vrot.slane %v372, %v1526
        %v1528 = vadd.f32 %v1523, %v1527
        %1529 = vst [vmem:[%s369] sm:$0xff] %v1528
        %s1530 = sand.u32 %s214, 1
        %s1531 = scalar_lea.sflag [#allocation4], %s1530
        %s1532 = sand.u32 %s214, 1
        %s1533 = smul.addr %s1532, 8
        %s1534 = scalar_lea.vmem [#allocation8], %s1533
        // Predicated region
        $region65: #{tpu_custom_call.1} parent=51 // pred_check
          %p1535 = pneg %p224
        $region66: #{tpu_custom_call.1} parent=51 // pred_check_branch
          %1537 = sbr.rel (%p1535) target = $region68
        $region67: #{tpu_custom_call.1} parent=51 // pred_region
          %s1539 = ssub.s32 128, 128
          %1540 = vsyncadd %s1531, %s1539
          %s1541 = smul.addr %s28, 128
          %s1542 = scalar_lea.hbm %s8, %s1541
          %s1544 = sshll.u32 %s1534, 4
          %s1545 = int_to_ptr.vmem [resolvable:$true] %s1544
          %1547 = dma.vmem_to_hbm [thread:$0]  %s1545, 128, %s1542, %s1531
        $region68: #{tpu_custom_call.1} parent=51 // pred_fallthru
          _
      $region52: #{tpu_custom_call.1} parent=5 // pred_fallthru
        _
      %p1548 = scmp.le.s32.totalorder 2, %s23
      // Predicated region
      $region69: #{tpu_custom_call.1} parent=5 // pred_check
        %p1549 = pneg %p1548
      $region70: #{tpu_custom_call.1} parent=5 // pred_check_branch
        %1551 = sbr.rel (%p1549) target = $region72
      $region71: #{tpu_custom_call.1} parent=5 // pred_region
        %s1552 = ssub.s32 %s23, 2
        // Predicated region
        $region73: #{tpu_custom_call.1} parent=71 // pred_check
          %p1553 = pneg %p230
        $region74: #{tpu_custom_call.1} parent=71 // pred_check_branch
          %1555 = sbr.rel (%p1553) target = $region76
        $region75: #{tpu_custom_call.1} parent=71 // pred_region
          %s1556 = sand.u32 %s215, 1
          %s1557 = scalar_lea.sflag [#allocation4], %s1556
          %s1558 = sand.u32 %s215, 1
          %s1559 = smul.addr %s1558, 8
          %s1560 = scalar_lea.vmem [#allocation8], %s1559
          %1561 = dma.done %s1557, 128
        $region76: #{tpu_custom_call.1} parent=71 // pred_fallthru
          _
      $region72: #{tpu_custom_call.1} parent=5 // pred_fallthru
        _
    $region6: #{tpu_custom_call.1} parent=1 // loop_footer
      %s27 = sadd.s32 1, %s23
    $region7: #{tpu_custom_call.1} parent=1 // loop_footer_branch
      %22 = sbr.rel target = $region3
    $region8: #{tpu_custom_call.1} parent=1 // loop_exit
      _
    %1562 = vsyncpa [#allocation3], 1
    %s1563 = scalar_lea.sflag [#allocation3], 1
    %1564 = vsyncpa %s1563, 1
    %1565 = vsyncpa [#allocation6], 1
    %s1566 = scalar_lea.sflag [#allocation6], 1
    %1567 = vsyncpa %s1566, 1
    %1568 = vsyncpa [#allocation4], 1
    %s1569 = scalar_lea.sflag [#allocation4], 1
    %1570 = vsyncpa %s1569, 1

</llo_original>
